<compile_context>
chip_gen: v5e
topology: v5e:2x2
jax: 0.10.0
libtpu: 0.0.40
codegen_flags: <defaults>
</compile_context>

<pallas_src>
import functools
import math

import numpy as np
import jax
import jax.numpy as jnp
from jax.experimental import pallas as pl
from jax.experimental.pallas import tpu as pltpu


# ----------------------------------------------------------------------------
# Sin/Cos positional table (getSinCosEncoding equivalent)
# ----------------------------------------------------------------------------
def sincos_encoding(n_position, d_model):
    pos = np.arange(n_position, dtype=np.float64)[:, None]
    idx = np.arange(d_model, dtype=np.float64)[None, :]
    angle = pos / np.power(10000.0, 2.0 * np.floor(idx / 2.0) / d_model)
    table = np.zeros((n_position, d_model), dtype=np.float64)
    table[:, 0::2] = np.sin(angle[:, 0::2])
    table[:, 1::2] = np.cos(angle[:, 1::2])
    return jnp.asarray(table, dtype=jnp.float32)


# ----------------------------------------------------------------------------
# Pallas kernel: full encoder stack (grid axis = layer, activation resident)
# ----------------------------------------------------------------------------
def _bert_stack_kernel(x_ref, bias_ref,
                       wq_ref, bq_ref, wk_ref, bk_ref, wv_ref, bv_ref,
                       wo_ref, bo_ref, g1_ref, be1_ref,
                       w1_ref, b1_ref, w2_ref, b2_ref, g2_ref, be2_ref,
                       out_ref, *rest,
                       n_heads, d_k, d_v, return_attn):
    if return_attn:
        attn_ref, ctx_ref = rest
    else:
        attn_ref = None
        (ctx_ref,) = rest

    B, Sp, D = out_ref.shape
    M = B * Sp

    # Layer 0: load the embedded input into the resident activation block.
    @pl.when(pl.program_id(0) == 0)
    def _():
        out_ref[...] = x_ref[...]

    x = out_ref[...].reshape(M, D)            # (B*Sp, D) f32 resident activation
    x_bf = x.astype(jnp.bfloat16)
    bias = bias_ref[...]                      # (B, 1, Sp) additive pad bias

    # QKV projections, all heads at once, batch folded into M.
    # (wq/bq are pre-scaled by 1/sqrt(d_k) on the host.)
    q_all = jnp.dot(x_bf, wq_ref[0], preferred_element_type=jnp.float32) + bq_ref[0]
    k_all = jnp.dot(x_bf, wk_ref[0], preferred_element_type=jnp.float32) + bk_ref[0]
    v_all = jnp.dot(x_bf, wv_ref[0], preferred_element_type=jnp.float32) + bv_ref[0]

    # Per-head attention; contexts go straight into a VMEM scratch slab so the
    # output projection is a single matmul with K = n_heads*d_v (no concat).
    # TODO(synk): at realistic head counts (12+) switch to a fully batched
    #             (B*H, S, d) einsum / fori_loop instead of a static unroll.
    for h in range(n_heads):
        q = q_all[:, h * d_k:(h + 1) * d_k].astype(jnp.bfloat16).reshape(B, Sp, d_k)
        k = k_all[:, h * d_k:(h + 1) * d_k].astype(jnp.bfloat16).reshape(B, Sp, d_k)
        v = v_all[:, h * d_v:(h + 1) * d_v].astype(jnp.bfloat16).reshape(B, Sp, d_v)

        s = jnp.einsum('bqd,bkd->bqk', q, k,
                       preferred_element_type=jnp.float32) + bias     # (B,Sp,Sp)
        m = jnp.max(s, axis=-1, keepdims=True)
        e = jnp.exp(s - m)
        p = e * pl.reciprocal(jnp.sum(e, axis=-1, keepdims=True), approx=True)
        if return_attn:
            attn_ref[0, h] = p                                        # (B,Sp,Sp)

        ctx = jnp.einsum('bqk,bkd->bqd', p.astype(jnp.bfloat16), v,
                         preferred_element_type=jnp.float32)          # (B,Sp,dv)
        ctx_ref[:, h * d_v:(h + 1) * d_v] = ctx.reshape(M, d_v)

    ctx_all = ctx_ref[...].astype(jnp.bfloat16)                       # (M, H*dv)
    attn_out = jnp.dot(ctx_all, wo_ref[0],
                       preferred_element_type=jnp.float32) + bo_ref[0]

    def layernorm(z, g, b):
        mu = jnp.mean(z, axis=-1, keepdims=True)
        var = jnp.mean((z - mu) ** 2, axis=-1, keepdims=True)
        return (z - mu) * jax.lax.rsqrt(var + 1e-5) * g + b

    # residual + LayerNorm (attention sub-layer)
    y = layernorm(attn_out + x, g1_ref[0], be1_ref[0])

    # position-wise FFN (bf16 MXU operands, f32 elementwise)
    h1 = jnp.dot(y.astype(jnp.bfloat16), w1_ref[0],
                 preferred_element_type=jnp.float32) + b1_ref[0]
    # TODO(synk): reference gelu uses exact erf; tanh-approx GELU used here.
    h1 = jax.nn.gelu(h1, approximate=True)
    h2 = jnp.dot(h1.astype(jnp.bfloat16), w2_ref[0],
                 preferred_element_type=jnp.float32) + b2_ref[0]

    # residual + LayerNorm (FFN sub-layer) -> back into the resident block
    out_ref[...] = layernorm(h2 + y, g2_ref[0], be2_ref[0]).reshape(B, Sp, D)


_WKEYS = ('wq', 'bq', 'wk', 'bk', 'wv', 'bv', 'wo', 'bo',
          'g1', 'be1', 'w1', 'b1', 'w2', 'b2', 'g2', 'be2')
_MATMUL_W = frozenset(('wq', 'wk', 'wv', 'wo', 'w1', 'w2'))


def _stack_params(layers, d_k):
    """Stack per-layer params along a leading L axis; fold the 1/sqrt(d_k)
    attention scale into the Q projection; cast matmul weights to bf16."""
    scale = 1.0 / math.sqrt(d_k)
    stacked = {k: jnp.stack([lp[k] for lp in layers], axis=0) for k in _WKEYS}
    stacked['wq'] = stacked['wq'] * scale
    stacked['bq'] = stacked['bq'] * scale
    return [stacked[k].astype(jnp.bfloat16) if k in _MATMUL_W else stacked[k]
            for k in _WKEYS]


def encoder_stack(x, bias, layers, *, n_heads, d_k, d_v, return_attn=True):
    B, S, D = x.shape
    L = len(layers)

    # pad the sequence dim to a sublane multiple (8): padded keys are masked
    # via the additive bias, padded query rows are sliced off afterwards.
    Sp = max(8, ((S + 7) // 8) * 8)
    if Sp != S:
        x = jnp.pad(x, ((0, 0), (0, Sp - S), (0, 0)))
        bias = jnp.pad(bias, ((0, 0), (0, 0), (0, Sp - S)), constant_values=-1e9)

    weights = _stack_params(layers, d_k)

    in_specs = ([pl.BlockSpec((B, Sp, D), lambda l: (0, 0, 0)),      # x (layer-invariant)
                 pl.BlockSpec((B, 1, Sp), lambda l: (0, 0, 0))] +    # pad bias
                [pl.BlockSpec((1,) + tuple(w.shape[1:]), lambda l: (l, 0, 0))
                 for w in weights])                                  # per-layer weights

    out_specs = [pl.BlockSpec((B, Sp, D), lambda l: (0, 0, 0))]      # resident activation
    out_shape = [jax.ShapeDtypeStruct((B, Sp, D), jnp.float32)]
    if return_attn:
        out_specs.append(pl.BlockSpec((1, n_heads, B, Sp, Sp),
                                      lambda l: (l, 0, 0, 0, 0)))
        out_shape.append(jax.ShapeDtypeStruct((L, n_heads, B, Sp, Sp), jnp.float32))

    kernel = functools.partial(_bert_stack_kernel, n_heads=n_heads, d_k=d_k,
                               d_v=d_v, return_attn=return_attn)

    res = pl.pallas_call(
        kernel,
        out_shape=tuple(out_shape) if return_attn else out_shape[0],
        grid_spec=pltpu.PrefetchScalarGridSpec(
            num_scalar_prefetch=0,
            grid=(L,),                                   # sequential over layers
            in_specs=in_specs,
            out_specs=tuple(out_specs) if return_attn else out_specs[0],
            scratch_shapes=[pltpu.VMEM((B * Sp, n_heads * d_v), jnp.float32)]),
        compiler_params=pltpu.CompilerParams(
            dimension_semantics=("arbitrary",),          # layer axis is sequential
            # toy config needs only ~100s of KB; tile w1/w2 over d_ff and
            # re-derive for BERT-base sizes (esp. v7x's 64 MiB VMEM).
            vmem_limit_bytes=32 * 1024 * 1024),
    )(x, bias, *weights)

    if return_attn:
        out, attn_all = res
        out = out[:, :S, :]
        # (L, H, B, Sp, Sp) -> per-layer (B, H, S, S)
        attns = [jnp.transpose(attn_all[l], (1, 0, 2, 3))[:, :, :S, :S]
                 for l in range(L)]
        return out, attns
    return res[:, :S, :], []


# ----------------------------------------------------------------------------
# Parameter init (deterministic, mimics PyTorch default inits)
# ----------------------------------------------------------------------------
def init_bert_params(key, vocab_size, seq_length, d_model, n_hidden,
                     d_k, d_v, n_layers, n_heads):
    d_ff = n_hidden * 4
    keys = jax.random.split(key, 2 + n_layers)
    params = {
        'src_emb': jax.random.normal(keys[0], (vocab_size, d_model), jnp.float32),
        'pos_emb': sincos_encoding(seq_length + 1, d_model),   # frozen sin/cos
        'seg_emb': jax.random.normal(keys[1], (2, d_model), jnp.float32),
        'layers': [],
    }

    def linear(k, fan_in, fan_out):
        kw, kb = jax.random.split(k)
        bound = 1.0 / math.sqrt(fan_in)
        w = jax.random.uniform(kw, (fan_in, fan_out), jnp.float32, -bound, bound)
        b = jax.random.uniform(kb, (1, fan_out), jnp.float32, -bound, bound)
        return w, b

    for l in range(n_layers):
        lk = jax.random.split(keys[2 + l], 6)
        wq, bq = linear(lk[0], d_model, n_heads * d_k)
        wk, bk = linear(lk[1], d_model, n_heads * d_k)
        wv, bv = linear(lk[2], d_model, n_heads * d_v)
        wo, bo = linear(lk[3], n_heads * d_v, d_model)
        w1, b1 = linear(lk[4], d_model, d_ff)
        w2, b2 = linear(lk[5], d_ff, d_model)
        params['layers'].append(dict(
            wq=wq, bq=bq, wk=wk, bk=bk, wv=wv, bv=bv, wo=wo, bo=bo,
            g1=jnp.ones((1, d_model), jnp.float32),
            be1=jnp.zeros((1, d_model), jnp.float32),
            w1=w1, b1=b1, w2=w2, b2=b2,
            g2=jnp.ones((1, d_model), jnp.float32),
            be2=jnp.zeros((1, d_model), jnp.float32)))
    return params


# ----------------------------------------------------------------------------
# BERT forward (embeddings + pad-bias in plain JAX, encoder stack in Pallas)
# ----------------------------------------------------------------------------
def bert_forward(params, encoder_inputs, segment_info, *, n_heads, d_k, d_v,
                 return_attn=True):
    # hard-coded positional indices exactly as in the reference forward()
    pos_ids = jnp.array([[1, 2, 3, 4, 0]], dtype=jnp.int32)      # (1, 5) => S must be 5
    x = (params['src_emb'][encoder_inputs]
         + params['pos_emb'][pos_ids]          # broadcasts over batch
         + params['seg_emb'][segment_info])

    # getAttentionPadMask converted to an additive (B, 1, S) bias:
    # -1e9 where the KEY token is PAD (==0), 0 elsewhere.
    bias = jnp.where(encoder_inputs == 0, -1e9, 0.0).astype(jnp.float32)[:, None, :]

    return encoder_stack(x, bias, params['layers'], n_heads=n_heads,
                         d_k=d_k, d_v=d_v, return_attn=return_attn)


# ----------------------------------------------------------------------------
# Pure-JAX f32 reference (original module semantics) for sanity check
# ----------------------------------------------------------------------------
def encoder_layer_ref(x, mask, p, *, n_heads, d_k, d_v):
    B, S, D = x.shape

    def split(z, dh):
        return z.reshape(B, S, n_heads, dh).transpose(0, 2, 1, 3)

    q = split(x @ p['wq'] + p['bq'], d_k)
    k = split(x @ p['wk'] + p['bk'], d_k)
    v = split(x @ p['wv'] + p['bv'], d_v)
    scores = jnp.einsum('bhqd,bhkd->bhqk', q, k) / math.sqrt(d_k)
    scores = jnp.where(mask[:, None, :, :] > 0.5, -1e9, scores)
    attn = jax.nn.softmax(scores, axis=-1)
    ctx = jnp.einsum('bhqk,bhkd->bhqd', attn, v)
    ctx = ctx.transpose(0, 2, 1, 3).reshape(B, S, n_heads * d_v)
    out = ctx @ p['wo'] + p['bo']

    def ln(z, g, b):
        mu = z.mean(-1, keepdims=True)
        var = ((z - mu) ** 2).mean(-1, keepdims=True)
        return (z - mu) / jnp.sqrt(var + 1e-5) * g + b

    y = ln(out + x, p['g1'], p['be1'])
    h = jax.nn.gelu(y @ p['w1'] + p['b1'], approximate=True)
    z = h @ p['w2'] + p['b2']
    return ln(z + y, p['g2'], p['be2']), attn


def bert_forward_ref(params, encoder_inputs, segment_info, *, n_heads, d_k, d_v):
    B, S = encoder_inputs.shape
    pos_ids = jnp.array([[1, 2, 3, 4, 0]], dtype=jnp.int32)
    x = (params['src_emb'][encoder_inputs]
         + params['pos_emb'][pos_ids]
         + params['seg_emb'][segment_info])
    pad = (encoder_inputs == 0)[:, None, :]
    mask = jnp.broadcast_to(pad, (B, S, S)).astype(jnp.float32)
    attns = []
    for lp in params['layers']:
        x, attn = encoder_layer_ref(x, mask, lp, n_heads=n_heads, d_k=d_k, d_v=d_v)
        attns.append(attn)
    return x, attns


# ----------------------------------------------------------------------------
if __name__ == "__main__":
    vocab_size = 20
    seq_length = 5          # forward() hard-codes positions [1,2,3,4,0] => seq = 5
    d_model = 32
    n_hidden = 32           # d_ffn = 128
    d_k = d_v = 8
    n_layers = 2
    n_heads = 2
    batch = 2

    key = jax.random.PRNGKey(0)
    params = init_bert_params(key, vocab_size, seq_length, d_model, n_hidden,
                              d_k, d_v, n_layers, n_heads)

    # tokens with PAD=0 entries to exercise the attention pad mask
    encoder_inputs = jnp.array([[5, 7, 2, 0, 0],
                                [3, 9, 4, 6, 0]], dtype=jnp.int32)
    segment_info = jnp.array([[0, 0, 1, 1, 1],
                              [0, 0, 0, 1, 1]], dtype=jnp.int32)

    out, attns = bert_forward(params, encoder_inputs, segment_info,
                              n_heads=n_heads, d_k=d_k, d_v=d_v,
                              return_attn=True)
    out = jax.block_until_ready(out)
    attns = [jax.block_until_ready(a) for a in attns]

    # sanity check vs pure-JAX f32 reference (kernel uses bf16 MXU operands and
    # an approx EUP reciprocal, hence the looser tolerance)
    out_ref, attns_ref = bert_forward_ref(params, encoder_inputs, segment_info,
                                          n_heads=n_heads, d_k=d_k, d_v=d_v)
    assert out.shape == (batch, seq_length, d_model)
    assert len(attns) == n_layers
    assert all(a.shape == (batch, n_heads, seq_length, seq_length) for a in attns)
    np.testing.assert_allclose(np.asarray(out), np.asarray(out_ref),
                               rtol=5e-2, atol=5e-2)
    for a, ar in zip(attns, attns_ref):
        np.testing.assert_allclose(np.asarray(a), np.asarray(ar),
                                   rtol=2e-2, atol=2e-2)

    print("KERNEL_OK")
</pallas_src>

<mosaic_0001>
module attributes {stable_mosaic.version = 11 : i64} {
  func.func @_bert_stack_kernel(%arg0: i32, %arg1: memref<2x8x32xf32, #tpu.memory_space<vmem>>, %arg2: memref<2x1x8xf32, #tpu.memory_space<vmem>>, %arg3: memref<1x32x16xbf16, #tpu.memory_space<vmem>>, %arg4: memref<1x1x16xf32, #tpu.memory_space<vmem>>, %arg5: memref<1x32x16xbf16, #tpu.memory_space<vmem>>, %arg6: memref<1x1x16xf32, #tpu.memory_space<vmem>>, %arg7: memref<1x32x16xbf16, #tpu.memory_space<vmem>>, %arg8: memref<1x1x16xf32, #tpu.memory_space<vmem>>, %arg9: memref<1x16x32xbf16, #tpu.memory_space<vmem>>, %arg10: memref<1x1x32xf32, #tpu.memory_space<vmem>>, %arg11: memref<1x1x32xf32, #tpu.memory_space<vmem>>, %arg12: memref<1x1x32xf32, #tpu.memory_space<vmem>>, %arg13: memref<1x32x128xbf16, #tpu.memory_space<vmem>>, %arg14: memref<1x1x128xf32, #tpu.memory_space<vmem>>, %arg15: memref<1x128x32xbf16, #tpu.memory_space<vmem>>, %arg16: memref<1x1x32xf32, #tpu.memory_space<vmem>>, %arg17: memref<1x1x32xf32, #tpu.memory_space<vmem>>, %arg18: memref<1x1x32xf32, #tpu.memory_space<vmem>>, %arg19: memref<2x8x32xf32, #tpu.memory_space<vmem>>, %arg20: memref<1x2x2x8x8xf32, #tpu.memory_space<vmem>>, %arg21: memref<16x16xf32, #tpu.memory_space<vmem>>) attributes {dimension_semantics = [#tpu.dimension_semantics<arbitrary>], iteration_bounds = array<i64: 2>, scalar_prefetch = 0 : i64, scratch_operands = 1 : i64, tpu.core_type = #tpu.core_type<tc>, window_params = [{pipeline_mode = #tpu.pipeline_mode<synchronous>, transform_indices = @transform_0, window_bounds = array<i64: 2, 8, 32>}, {pipeline_mode = #tpu.pipeline_mode<synchronous>, transform_indices = @transform_1, window_bounds = array<i64: 2, 1, 8>}, {transform_indices = @transform_2, window_bounds = array<i64: 1, 32, 16>}, {transform_indices = @transform_3, window_bounds = array<i64: 1, 1, 16>}, {transform_indices = @transform_4, window_bounds = array<i64: 1, 32, 16>}, {transform_indices = @transform_5, window_bounds = array<i64: 1, 1, 16>}, {transform_indices = @transform_6, window_bounds = array<i64: 1, 32, 16>}, {transform_indices = @transform_7, window_bounds = array<i64: 1, 1, 16>}, {transform_indices = @transform_8, window_bounds = array<i64: 1, 16, 32>}, {transform_indices = @transform_9, window_bounds = array<i64: 1, 1, 32>}, {transform_indices = @transform_10, window_bounds = array<i64: 1, 1, 32>}, {transform_indices = @transform_11, window_bounds = array<i64: 1, 1, 32>}, {transform_indices = @transform_12, window_bounds = array<i64: 1, 32, 128>}, {transform_indices = @transform_13, window_bounds = array<i64: 1, 1, 128>}, {transform_indices = @transform_14, window_bounds = array<i64: 1, 128, 32>}, {transform_indices = @transform_15, window_bounds = array<i64: 1, 1, 32>}, {transform_indices = @transform_16, window_bounds = array<i64: 1, 1, 32>}, {transform_indices = @transform_17, window_bounds = array<i64: 1, 1, 32>}, {pipeline_mode = #tpu.pipeline_mode<synchronous>, transform_indices = @transform_18, window_bounds = array<i64: 2, 8, 32>}, {transform_indices = @transform_19, window_bounds = array<i64: 1, 2, 2, 8, 8>}]} {
    %c0_i32 = arith.constant 0 : i32
    %0 = arith.cmpi eq, %arg0, %c0_i32 : i32
    %1 = arith.extui %0 : i1 to i32
    %c0_i32_0 = arith.constant 0 : i32
    %2 = arith.cmpi ne, %1, %c0_i32_0 : i32
    scf.if %2 {
      %c0_98 = arith.constant 0 : index
      %c0_99 = arith.constant 0 : index
      %c0_100 = arith.constant 0 : index
      %180 = vector.load %arg1[%c0_98, %c0_99, %c0_100] : memref<2x8x32xf32, #tpu.memory_space<vmem>>, vector<2x8x32xf32>
      %c0_101 = arith.constant 0 : index
      %c0_102 = arith.constant 0 : index
      %c0_103 = arith.constant 0 : index
      %181 = vector.load %arg19[%c0_101, %c0_102, %c0_103] : memref<2x8x32xf32, #tpu.memory_space<vmem>>, vector<2x8x32xf32>
      tpu.vector_store %arg19[%c0_101, %c0_102, %c0_103], %180 {strides = array<i32>} : memref<2x8x32xf32, #tpu.memory_space<vmem>>, vector<2x8x32xf32>,
    } else {
    }
    %c0 = arith.constant 0 : index
    %c0_1 = arith.constant 0 : index
    %c0_2 = arith.constant 0 : index
    %3 = vector.load %arg19[%c0, %c0_1, %c0_2] : memref<2x8x32xf32, #tpu.memory_space<vmem>>, vector<2x8x32xf32>
    %4 = vector.shape_cast %3 : vector<2x8x32xf32> to vector<16x32xf32>
    %5 = arith.truncf %4 : vector<16x32xf32> to vector<16x32xbf16>
    %c0_3 = arith.constant 0 : index
    %c0_4 = arith.constant 0 : index
    %c0_5 = arith.constant 0 : index
    %6 = vector.load %arg2[%c0_3, %c0_4, %c0_5] : memref<2x1x8xf32, #tpu.memory_space<vmem>>, vector<2x1x8xf32>
    %c0_6 = arith.constant 0 : index
    %c0_7 = arith.constant 0 : index
    %c0_8 = arith.constant 0 : index
    %7 = vector.load %arg3[%c0_6, %c0_7, %c0_8] : memref<1x32x16xbf16, #tpu.memory_space<vmem>>, vector<1x32x16xbf16>
    %8 = vector.shape_cast %7 : vector<1x32x16xbf16> to vector<32x16xbf16>
    %cst = arith.constant dense<0.000000e+00> : vector<16x16xf32>
    %9 = tpu.matmul %5, %8, %cst {dimension_numbers = #tpu.dot_dimension_numbers<[1], [0], [0], [1], [0, 0, 1, 1], [], []>} : vector<16x32xbf16>, vector<32x16xbf16>, vector<16x16xf32> -> vector<16x16xf32>
    %c0_9 = arith.constant 0 : index
    %c0_10 = arith.constant 0 : index
    %c0_11 = arith.constant 0 : index
    %10 = vector.load %arg4[%c0_9, %c0_10, %c0_11] : memref<1x1x16xf32, #tpu.memory_space<vmem>>, vector<1x1x16xf32>
    %11 = vector.shape_cast %10 : vector<1x1x16xf32> to vector<1x16xf32>
    %12 = vector.broadcast %11 : vector<1x16xf32> to vector<16x16xf32>
    %13 = arith.addf %9, %12 : vector<16x16xf32>
    %c0_12 = arith.constant 0 : index
    %c0_13 = arith.constant 0 : index
    %c0_14 = arith.constant 0 : index
    %14 = vector.load %arg5[%c0_12, %c0_13, %c0_14] : memref<1x32x16xbf16, #tpu.memory_space<vmem>>, vector<1x32x16xbf16>
    %15 = vector.shape_cast %14 : vector<1x32x16xbf16> to vector<32x16xbf16>
    %cst_15 = arith.constant dense<0.000000e+00> : vector<16x16xf32>
    %16 = tpu.matmul %5, %15, %cst_15 {dimension_numbers = #tpu.dot_dimension_numbers<[1], [0], [0], [1], [0, 0, 1, 1], [], []>} : vector<16x32xbf16>, vector<32x16xbf16>, vector<16x16xf32> -> vector<16x16xf32>
    %c0_16 = arith.constant 0 : index
    %c0_17 = arith.constant 0 : index
    %c0_18 = arith.constant 0 : index
    %17 = vector.load %arg6[%c0_16, %c0_17, %c0_18] : memref<1x1x16xf32, #tpu.memory_space<vmem>>, vector<1x1x16xf32>
    %18 = vector.shape_cast %17 : vector<1x1x16xf32> to vector<1x16xf32>
    %19 = vector.broadcast %18 : vector<1x16xf32> to vector<16x16xf32>
    %20 = arith.addf %16, %19 : vector<16x16xf32>
    %c0_19 = arith.constant 0 : index
    %c0_20 = arith.constant 0 : index
    %c0_21 = arith.constant 0 : index
    %21 = vector.load %arg7[%c0_19, %c0_20, %c0_21] : memref<1x32x16xbf16, #tpu.memory_space<vmem>>, vector<1x32x16xbf16>
    %22 = vector.shape_cast %21 : vector<1x32x16xbf16> to vector<32x16xbf16>
    %cst_22 = arith.constant dense<0.000000e+00> : vector<16x16xf32>
    %23 = tpu.matmul %5, %22, %cst_22 {dimension_numbers = #tpu.dot_dimension_numbers<[1], [0], [0], [1], [0, 0, 1, 1], [], []>} : vector<16x32xbf16>, vector<32x16xbf16>, vector<16x16xf32> -> vector<16x16xf32>
    %c0_23 = arith.constant 0 : index
    %c0_24 = arith.constant 0 : index
    %c0_25 = arith.constant 0 : index
    %24 = vector.load %arg8[%c0_23, %c0_24, %c0_25] : memref<1x1x16xf32, #tpu.memory_space<vmem>>, vector<1x1x16xf32>
    %25 = vector.shape_cast %24 : vector<1x1x16xf32> to vector<1x16xf32>
    %26 = vector.broadcast %25 : vector<1x16xf32> to vector<16x16xf32>
    %27 = arith.addf %23, %26 : vector<16x16xf32>
    %28 = vector.extract_strided_slice %13 {offsets = [0, 0], sizes = [16, 8], strides = [1, 1]} : vector<16x16xf32> to vector<16x8xf32>
    %29 = arith.truncf %28 : vector<16x8xf32> to vector<16x8xbf16>
    %30 = vector.shape_cast %29 : vector<16x8xbf16> to vector<2x8x8xbf16>
    %31 = vector.extract_strided_slice %20 {offsets = [0, 0], sizes = [16, 8], strides = [1, 1]} : vector<16x16xf32> to vector<16x8xf32>
    %32 = arith.truncf %31 : vector<16x8xf32> to vector<16x8xbf16>
    %33 = vector.shape_cast %32 : vector<16x8xbf16> to vector<2x8x8xbf16>
    %34 = vector.extract_strided_slice %27 {offsets = [0, 0], sizes = [16, 8], strides = [1, 1]} : vector<16x16xf32> to vector<16x8xf32>
    %35 = arith.truncf %34 : vector<16x8xf32> to vector<16x8xbf16>
    %36 = vector.shape_cast %35 : vector<16x8xbf16> to vector<2x8x8xbf16>
    "tpu.trace_start"() <{level = 10 : i32, message = "bqd,bkd->bqk"}> : () -> ()
    %cst_26 = arith.constant dense<0.000000e+00> : vector<2x8x8xf32>
    %37 = tpu.matmul %30, %33, %cst_26 {dimension_numbers = #tpu.dot_dimension_numbers<[2], [2], [1], [1], [0, 0, 0, 1, 1, 1], [0], [0]>} : vector<2x8x8xbf16>, vector<2x8x8xbf16>, vector<2x8x8xf32> -> vector<2x8x8xf32>
    "tpu.trace_stop"() : () -> ()
    %38 = vector.broadcast %6 : vector<2x1x8xf32> to vector<2x8x8xf32>
    %39 = arith.addf %37, %38 : vector<2x8x8xf32>
    %cst_27 = arith.constant dense<0xFF800000> : vector<2x8xf32>
    %40 = vector.multi_reduction <maximumf>, %39, %cst_27 [2] : vector<2x8x8xf32> to vector<2x8xf32>
    %41 = vector.shape_cast %40 : vector<2x8xf32> to vector<2x8x1xf32>
    %42 = vector.broadcast %41 : vector<2x8x1xf32> to vector<2x8x8xf32>
    %43 = arith.subf %39, %42 : vector<2x8x8xf32>
    %44 = math.exp %43 : vector<2x8x8xf32>
    %cst_28 = arith.constant dense<0.000000e+00> : vector<2x8xf32>
    %45 = vector.multi_reduction <add>, %44, %cst_28 [2] : vector<2x8x8xf32> to vector<2x8xf32>
    %46 = vector.shape_cast %45 : vector<2x8xf32> to vector<2x8x1xf32>
    %47 = tpu.reciprocal %46 {approx = true} : vector<2x8x1xf32> -> vector<2x8x1xf32>
    %48 = vector.broadcast %47 : vector<2x8x1xf32> to vector<2x8x8xf32>
    %49 = arith.mulf %44, %48 : vector<2x8x8xf32>
    %c0_29 = arith.constant 0 : index
    %c0_30 = arith.constant 0 : index
    %c0_31 = arith.constant 0 : index
    %c0_32 = arith.constant 0 : index
    %c0_33 = arith.constant 0 : index
    %50 = vector.load %arg20[%c0_29, %c0_30, %c0_31, %c0_32, %c0_33] : memref<1x2x2x8x8xf32, #tpu.memory_space<vmem>>, vector<1x1x2x8x8xf32>
    %51 = vector.shape_cast %50 : vector<1x1x2x8x8xf32> to vector<2x8x8xf32>
    %52 = vector.shape_cast %49 : vector<2x8x8xf32> to vector<1x1x2x8x8xf32>
    tpu.vector_store %arg20[%c0_29, %c0_30, %c0_31, %c0_32, %c0_33], %52 {strides = array<i32>} : memref<1x2x2x8x8xf32, #tpu.memory_space<vmem>>, vector<1x1x2x8x8xf32>,
    %53 = arith.truncf %49 : vector<2x8x8xf32> to vector<2x8x8xbf16>
    "tpu.trace_start"() <{level = 10 : i32, message = "bqk,bkd->bqd"}> : () -> ()
    %cst_34 = arith.constant dense<0.000000e+00> : vector<2x8x8xf32>
    %54 = tpu.matmul %53, %36, %cst_34 {dimension_numbers = #tpu.dot_dimension_numbers<[2], [1], [1], [2], [0, 0, 0, 1, 1, 2], [0], [0]>} : vector<2x8x8xbf16>, vector<2x8x8xbf16>, vector<2x8x8xf32> -> vector<2x8x8xf32>
    "tpu.trace_stop"() : () -> ()
    %55 = vector.shape_cast %54 : vector<2x8x8xf32> to vector<16x8xf32>
    %c0_35 = arith.constant 0 : index
    %c0_36 = arith.constant 0 : index
    %56 = vector.load %arg21[%c0_35, %c0_36] : memref<16x16xf32, #tpu.memory_space<vmem>>, vector<16x8xf32>
    tpu.vector_store %arg21[%c0_35, %c0_36], %55 {strides = array<i32>} : memref<16x16xf32, #tpu.memory_space<vmem>>, vector<16x8xf32>,
    %57 = vector.extract_strided_slice %13 {offsets = [0, 8], sizes = [16, 8], strides = [1, 1]} : vector<16x16xf32> to vector<16x8xf32>
    %58 = arith.truncf %57 : vector<16x8xf32> to vector<16x8xbf16>
    %59 = vector.shape_cast %58 : vector<16x8xbf16> to vector<2x8x8xbf16>
    %60 = vector.extract_strided_slice %20 {offsets = [0, 8], sizes = [16, 8], strides = [1, 1]} : vector<16x16xf32> to vector<16x8xf32>
    %61 = arith.truncf %60 : vector<16x8xf32> to vector<16x8xbf16>
    %62 = vector.shape_cast %61 : vector<16x8xbf16> to vector<2x8x8xbf16>
    %63 = vector.extract_strided_slice %27 {offsets = [0, 8], sizes = [16, 8], strides = [1, 1]} : vector<16x16xf32> to vector<16x8xf32>
    %64 = arith.truncf %63 : vector<16x8xf32> to vector<16x8xbf16>
    %65 = vector.shape_cast %64 : vector<16x8xbf16> to vector<2x8x8xbf16>
    "tpu.trace_start"() <{level = 10 : i32, message = "bqd,bkd->bqk"}> : () -> ()
    %cst_37 = arith.constant dense<0.000000e+00> : vector<2x8x8xf32>
    %66 = tpu.matmul %59, %62, %cst_37 {dimension_numbers = #tpu.dot_dimension_numbers<[2], [2], [1], [1], [0, 0, 0, 1, 1, 1], [0], [0]>} : vector<2x8x8xbf16>, vector<2x8x8xbf16>, vector<2x8x8xf32> -> vector<2x8x8xf32>
    "tpu.trace_stop"() : () -> ()
    %67 = vector.broadcast %6 : vector<2x1x8xf32> to vector<2x8x8xf32>
    %68 = arith.addf %66, %67 : vector<2x8x8xf32>
    %cst_38 = arith.constant dense<0xFF800000> : vector<2x8xf32>
    %69 = vector.multi_reduction <maximumf>, %68, %cst_38 [2] : vector<2x8x8xf32> to vector<2x8xf32>
    %70 = vector.shape_cast %69 : vector<2x8xf32> to vector<2x8x1xf32>
    %71 = vector.broadcast %70 : vector<2x8x1xf32> to vector<2x8x8xf32>
    %72 = arith.subf %68, %71 : vector<2x8x8xf32>
    %73 = math.exp %72 : vector<2x8x8xf32>
    %cst_39 = arith.constant dense<0.000000e+00> : vector<2x8xf32>
    %74 = vector.multi_reduction <add>, %73, %cst_39 [2] : vector<2x8x8xf32> to vector<2x8xf32>
    %75 = vector.shape_cast %74 : vector<2x8xf32> to vector<2x8x1xf32>
    %76 = tpu.reciprocal %75 {approx = true} : vector<2x8x1xf32> -> vector<2x8x1xf32>
    %77 = vector.broadcast %76 : vector<2x8x1xf32> to vector<2x8x8xf32>
    %78 = arith.mulf %73, %77 : vector<2x8x8xf32>
    %c0_40 = arith.constant 0 : index
    %c1 = arith.constant 1 : index
    %c0_41 = arith.constant 0 : index
    %c0_42 = arith.constant 0 : index
    %c0_43 = arith.constant 0 : index
    %79 = vector.load %arg20[%c0_40, %c1, %c0_41, %c0_42, %c0_43] : memref<1x2x2x8x8xf32, #tpu.memory_space<vmem>>, vector<1x1x2x8x8xf32>
    %80 = vector.shape_cast %79 : vector<1x1x2x8x8xf32> to vector<2x8x8xf32>
    %81 = vector.shape_cast %78 : vector<2x8x8xf32> to vector<1x1x2x8x8xf32>
    tpu.vector_store %arg20[%c0_40, %c1, %c0_41, %c0_42, %c0_43], %81 {strides = array<i32>} : memref<1x2x2x8x8xf32, #tpu.memory_space<vmem>>, vector<1x1x2x8x8xf32>,
    %82 = arith.truncf %78 : vector<2x8x8xf32> to vector<2x8x8xbf16>
    "tpu.trace_start"() <{level = 10 : i32, message = "bqk,bkd->bqd"}> : () -> ()
    %cst_44 = arith.constant dense<0.000000e+00> : vector<2x8x8xf32>
    %83 = tpu.matmul %82, %65, %cst_44 {dimension_numbers = #tpu.dot_dimension_numbers<[2], [1], [1], [2], [0, 0, 0, 1, 1, 2], [0], [0]>} : vector<2x8x8xbf16>, vector<2x8x8xbf16>, vector<2x8x8xf32> -> vector<2x8x8xf32>
    "tpu.trace_stop"() : () -> ()
    %84 = vector.shape_cast %83 : vector<2x8x8xf32> to vector<16x8xf32>
    %c0_45 = arith.constant 0 : index
    %c8 = arith.constant 8 : index
    %85 = vector.load %arg21[%c0_45, %c8] : memref<16x16xf32, #tpu.memory_space<vmem>>, vector<16x8xf32>
    tpu.vector_store %arg21[%c0_45, %c8], %84 {strides = array<i32>} : memref<16x16xf32, #tpu.memory_space<vmem>>, vector<16x8xf32>,
    %c0_46 = arith.constant 0 : index
    %c0_47 = arith.constant 0 : index
    %86 = vector.load %arg21[%c0_46, %c0_47] : memref<16x16xf32, #tpu.memory_space<vmem>>, vector<16x16xf32>
    %87 = arith.truncf %86 : vector<16x16xf32> to vector<16x16xbf16>
    %c0_48 = arith.constant 0 : index
    %c0_49 = arith.constant 0 : index
    %c0_50 = arith.constant 0 : index
    %88 = vector.load %arg9[%c0_48, %c0_49, %c0_50] : memref<1x16x32xbf16, #tpu.memory_space<vmem>>, vector<1x16x32xbf16>
    %89 = vector.shape_cast %88 : vector<1x16x32xbf16> to vector<16x32xbf16>
    %cst_51 = arith.constant dense<0.000000e+00> : vector<16x32xf32>
    %90 = tpu.matmul %87, %89, %cst_51 {dimension_numbers = #tpu.dot_dimension_numbers<[1], [0], [0], [1], [0, 0, 1, 1], [], []>} : vector<16x16xbf16>, vector<16x32xbf16>, vector<16x32xf32> -> vector<16x32xf32>
    %c0_52 = arith.constant 0 : index
    %c0_53 = arith.constant 0 : index
    %c0_54 = arith.constant 0 : index
    %91 = vector.load %arg10[%c0_52, %c0_53, %c0_54] : memref<1x1x32xf32, #tpu.memory_space<vmem>>, vector<1x1x32xf32>
    %92 = vector.shape_cast %91 : vector<1x1x32xf32> to vector<1x32xf32>
    %93 = vector.broadcast %92 : vector<1x32xf32> to vector<16x32xf32>
    %94 = arith.addf %90, %93 : vector<16x32xf32>
    %95 = arith.addf %94, %4 : vector<16x32xf32>
    %c0_55 = arith.constant 0 : index
    %c0_56 = arith.constant 0 : index
    %c0_57 = arith.constant 0 : index
    %96 = vector.load %arg11[%c0_55, %c0_56, %c0_57] : memref<1x1x32xf32, #tpu.memory_space<vmem>>, vector<1x1x32xf32>
    %97 = vector.shape_cast %96 : vector<1x1x32xf32> to vector<1x32xf32>
    %c0_58 = arith.constant 0 : index
    %c0_59 = arith.constant 0 : index
    %c0_60 = arith.constant 0 : index
    %98 = vector.load %arg12[%c0_58, %c0_59, %c0_60] : memref<1x1x32xf32, #tpu.memory_space<vmem>>, vector<1x1x32xf32>
    %99 = vector.shape_cast %98 : vector<1x1x32xf32> to vector<1x32xf32>
    %cst_61 = arith.constant dense<0.000000e+00> : vector<16xf32>
    %100 = vector.multi_reduction <add>, %95, %cst_61 [1] : vector<16x32xf32> to vector<16xf32>
    %101 = vector.shape_cast %100 : vector<16xf32> to vector<16x1xf32>
    %cst_62 = arith.constant 3.200000e+01 : f32
    %102 = vector.broadcast %cst_62 : f32 to vector<16x1xf32>
    %103 = arith.divf %101, %102 : vector<16x1xf32>
    %104 = vector.broadcast %103 : vector<16x1xf32> to vector<16x32xf32>
    %105 = arith.subf %95, %104 : vector<16x32xf32>
    %106 = arith.mulf %105, %105 : vector<16x32xf32>
    %cst_63 = arith.constant dense<0.000000e+00> : vector<16xf32>
    %107 = vector.multi_reduction <add>, %106, %cst_63 [1] : vector<16x32xf32> to vector<16xf32>
    %108 = vector.shape_cast %107 : vector<16xf32> to vector<16x1xf32>
    %cst_64 = arith.constant 3.200000e+01 : f32
    %109 = vector.broadcast %cst_64 : f32 to vector<16x1xf32>
    %110 = arith.divf %108, %109 : vector<16x1xf32>
    %111 = vector.broadcast %103 : vector<16x1xf32> to vector<16x32xf32>
    %112 = arith.subf %95, %111 : vector<16x32xf32>
    %cst_65 = arith.constant 9.99999974E-6 : f32
    %113 = vector.broadcast %cst_65 : f32 to vector<16x1xf32>
    %114 = arith.addf %110, %113 : vector<16x1xf32>
    %115 = math.rsqrt %114 : vector<16x1xf32>
    %116 = vector.broadcast %115 : vector<16x1xf32> to vector<16x32xf32>
    %117 = arith.mulf %112, %116 : vector<16x32xf32>
    %118 = vector.broadcast %97 : vector<1x32xf32> to vector<16x32xf32>
    %119 = arith.mulf %117, %118 : vector<16x32xf32>
    %120 = vector.broadcast %99 : vector<1x32xf32> to vector<16x32xf32>
    %121 = arith.addf %119, %120 : vector<16x32xf32>
    %122 = arith.truncf %121 : vector<16x32xf32> to vector<16x32xbf16>
    %c0_66 = arith.constant 0 : index
    %c0_67 = arith.constant 0 : index
    %c0_68 = arith.constant 0 : index
    %123 = vector.load %arg13[%c0_66, %c0_67, %c0_68] : memref<1x32x128xbf16, #tpu.memory_space<vmem>>, vector<1x32x128xbf16>
    %124 = vector.shape_cast %123 : vector<1x32x128xbf16> to vector<32x128xbf16>
    %cst_69 = arith.constant dense<0.000000e+00> : vector<16x128xf32>
    %125 = tpu.matmul %122, %124, %cst_69 {dimension_numbers = #tpu.dot_dimension_numbers<[1], [0], [0], [1], [0, 0, 1, 1], [], []>} : vector<16x32xbf16>, vector<32x128xbf16>, vector<16x128xf32> -> vector<16x128xf32>
    %c0_70 = arith.constant 0 : index
    %c0_71 = arith.constant 0 : index
    %c0_72 = arith.constant 0 : index
    %126 = vector.load %arg14[%c0_70, %c0_71, %c0_72] : memref<1x1x128xf32, #tpu.memory_space<vmem>>, vector<1x1x128xf32>
    %127 = vector.shape_cast %126 : vector<1x1x128xf32> to vector<1x128xf32>
    %128 = vector.broadcast %127 : vector<1x128xf32> to vector<16x128xf32>
    %129 = arith.addf %125, %128 : vector<16x128xf32>
    %130 = arith.mulf %129, %129 : vector<16x128xf32>
    %131 = arith.mulf %129, %130 : vector<16x128xf32>
    %cst_73 = arith.constant 4.471500e-02 : f32
    %132 = vector.broadcast %cst_73 : f32 to vector<16x128xf32>
    %133 = arith.mulf %132, %131 : vector<16x128xf32>
    %134 = arith.addf %129, %133 : vector<16x128xf32>
    %cst_74 = arith.constant 0.797884583 : f32
    %135 = vector.broadcast %cst_74 : f32 to vector<16x128xf32>
    %136 = arith.mulf %135, %134 : vector<16x128xf32>
    %137 = math.tanh %136 : vector<16x128xf32>
    %cst_75 = arith.constant 1.000000e+00 : f32
    %138 = vector.broadcast %cst_75 : f32 to vector<16x128xf32>
    %139 = arith.addf %138, %137 : vector<16x128xf32>
    %cst_76 = arith.constant 5.000000e-01 : f32
    %140 = vector.broadcast %cst_76 : f32 to vector<16x128xf32>
    %141 = arith.mulf %140, %139 : vector<16x128xf32>
    %142 = arith.mulf %129, %141 : vector<16x128xf32>
    %143 = arith.truncf %142 : vector<16x128xf32> to vector<16x128xbf16>
    %c0_77 = arith.constant 0 : index
    %c0_78 = arith.constant 0 : index
    %c0_79 = arith.constant 0 : index
    %144 = vector.load %arg15[%c0_77, %c0_78, %c0_79] : memref<1x128x32xbf16, #tpu.memory_space<vmem>>, vector<1x128x32xbf16>
    %145 = vector.shape_cast %144 : vector<1x128x32xbf16> to vector<128x32xbf16>
    %cst_80 = arith.constant dense<0.000000e+00> : vector<16x32xf32>
    %146 = tpu.matmul %143, %145, %cst_80 {dimension_numbers = #tpu.dot_dimension_numbers<[1], [0], [0], [1], [0, 0, 1, 1], [], []>} : vector<16x128xbf16>, vector<128x32xbf16>, vector<16x32xf32> -> vector<16x32xf32>
    %c0_81 = arith.constant 0 : index
    %c0_82 = arith.constant 0 : index
    %c0_83 = arith.constant 0 : index
    %147 = vector.load %arg16[%c0_81, %c0_82, %c0_83] : memref<1x1x32xf32, #tpu.memory_space<vmem>>, vector<1x1x32xf32>
    %148 = vector.shape_cast %147 : vector<1x1x32xf32> to vector<1x32xf32>
    %149 = vector.broadcast %148 : vector<1x32xf32> to vector<16x32xf32>
    %150 = arith.addf %146, %149 : vector<16x32xf32>
    %151 = arith.addf %150, %121 : vector<16x32xf32>
    %c0_84 = arith.constant 0 : index
    %c0_85 = arith.constant 0 : index
    %c0_86 = arith.constant 0 : index
    %152 = vector.load %arg17[%c0_84, %c0_85, %c0_86] : memref<1x1x32xf32, #tpu.memory_space<vmem>>, vector<1x1x32xf32>
    %153 = vector.shape_cast %152 : vector<1x1x32xf32> to vector<1x32xf32>
    %c0_87 = arith.constant 0 : index
    %c0_88 = arith.constant 0 : index
    %c0_89 = arith.constant 0 : index
    %154 = vector.load %arg18[%c0_87, %c0_88, %c0_89] : memref<1x1x32xf32, #tpu.memory_space<vmem>>, vector<1x1x32xf32>
    %155 = vector.shape_cast %154 : vector<1x1x32xf32> to vector<1x32xf32>
    %cst_90 = arith.constant dense<0.000000e+00> : vector<16xf32>
    %156 = vector.multi_reduction <add>, %151, %cst_90 [1] : vector<16x32xf32> to vector<16xf32>
    %157 = vector.shape_cast %156 : vector<16xf32> to vector<16x1xf32>
    %cst_91 = arith.constant 3.200000e+01 : f32
    %158 = vector.broadcast %cst_91 : f32 to vector<16x1xf32>
    %159 = arith.divf %157, %158 : vector<16x1xf32>
    %160 = vector.broadcast %159 : vector<16x1xf32> to vector<16x32xf32>
    %161 = arith.subf %151, %160 : vector<16x32xf32>
    %162 = arith.mulf %161, %161 : vector<16x32xf32>
    %cst_92 = arith.constant dense<0.000000e+00> : vector<16xf32>
    %163 = vector.multi_reduction <add>, %162, %cst_92 [1] : vector<16x32xf32> to vector<16xf32>
    %164 = vector.shape_cast %163 : vector<16xf32> to vector<16x1xf32>
    %cst_93 = arith.constant 3.200000e+01 : f32
    %165 = vector.broadcast %cst_93 : f32 to vector<16x1xf32>
    %166 = arith.divf %164, %165 : vector<16x1xf32>
    %167 = vector.broadcast %159 : vector<16x1xf32> to vector<16x32xf32>
    %168 = arith.subf %151, %167 : vector<16x32xf32>
    %cst_94 = arith.constant 9.99999974E-6 : f32
    %169 = vector.broadcast %cst_94 : f32 to vector<16x1xf32>
    %170 = arith.addf %166, %169 : vector<16x1xf32>
    %171 = math.rsqrt %170 : vector<16x1xf32>
    %172 = vector.broadcast %171 : vector<16x1xf32> to vector<16x32xf32>
    %173 = arith.mulf %168, %172 : vector<16x32xf32>
    %174 = vector.broadcast %153 : vector<1x32xf32> to vector<16x32xf32>
    %175 = arith.mulf %173, %174 : vector<16x32xf32>
    %176 = vector.broadcast %155 : vector<1x32xf32> to vector<16x32xf32>
    %177 = arith.addf %175, %176 : vector<16x32xf32>
    %178 = vector.shape_cast %177 : vector<16x32xf32> to vector<2x8x32xf32>
    %c0_95 = arith.constant 0 : index
    %c0_96 = arith.constant 0 : index
    %c0_97 = arith.constant 0 : index
    %179 = vector.load %arg19[%c0_95, %c0_96, %c0_97] : memref<2x8x32xf32, #tpu.memory_space<vmem>>, vector<2x8x32xf32>
    tpu.vector_store %arg19[%c0_95, %c0_96, %c0_97], %178 {strides = array<i32>} : memref<2x8x32xf32, #tpu.memory_space<vmem>>, vector<2x8x32xf32>,
    return
  }
  func.func @transform_0(%arg0: i32) -> (i32, i32, i32) {
    %c0_i32 = arith.constant 0 : i32
    %c0_i32_0 = arith.constant 0 : i32
    %c0_i32_1 = arith.constant 0 : i32
    %c0_i32_2 = arith.constant 0 : i32
    return %c0_i32, %c0_i32_0, %c0_i32_1 : i32, i32, i32
  }
  func.func @transform_1(%arg0: i32) -> (i32, i32, i32) {
    %c0_i32 = arith.constant 0 : i32
    %c0_i32_0 = arith.constant 0 : i32
    %c0_i32_1 = arith.constant 0 : i32
    %c0_i32_2 = arith.constant 0 : i32
    return %c0_i32, %c0_i32_0, %c0_i32_1 : i32, i32, i32
  }
  func.func @transform_2(%arg0: i32) -> (i32, i32, i32) {
    %c0_i32 = arith.constant 0 : i32
    %c0_i32_0 = arith.constant 0 : i32
    %c0_i32_1 = arith.constant 0 : i32
    return %arg0, %c0_i32, %c0_i32_0 : i32, i32, i32
  }
  func.func @transform_3(%arg0: i32) -> (i32, i32, i32) {
    %c0_i32 = arith.constant 0 : i32
    %c0_i32_0 = arith.constant 0 : i32
    %c0_i32_1 = arith.constant 0 : i32
    return %arg0, %c0_i32, %c0_i32_0 : i32, i32, i32
  }
  func.func @transform_4(%arg0: i32) -> (i32, i32, i32) {
    %c0_i32 = arith.constant 0 : i32
    %c0_i32_0 = arith.constant 0 : i32
    %c0_i32_1 = arith.constant 0 : i32
    return %arg0, %c0_i32, %c0_i32_0 : i32, i32, i32
  }
  func.func @transform_5(%arg0: i32) -> (i32, i32, i32) {
    %c0_i32 = arith.constant 0 : i32
    %c0_i32_0 = arith.constant 0 : i32
    %c0_i32_1 = arith.constant 0 : i32
    return %arg0, %c0_i32, %c0_i32_0 : i32, i32, i32
  }
  func.func @transform_6(%arg0: i32) -> (i32, i32, i32) {
    %c0_i32 = arith.constant 0 : i32
    %c0_i32_0 = arith.constant 0 : i32
    %c0_i32_1 = arith.constant 0 : i32
    return %arg0, %c0_i32, %c0_i32_0 : i32, i32, i32
  }
  func.func @transform_7(%arg0: i32) -> (i32, i32, i32) {
    %c0_i32 = arith.constant 0 : i32
    %c0_i32_0 = arith.constant 0 : i32
    %c0_i32_1 = arith.constant 0 : i32
    return %arg0, %c0_i32, %c0_i32_0 : i32, i32, i32
  }
  func.func @transform_8(%arg0: i32) -> (i32, i32, i32) {
    %c0_i32 = arith.constant 0 : i32
    %c0_i32_0 = arith.constant 0 : i32
    %c0_i32_1 = arith.constant 0 : i32
    return %arg0, %c0_i32, %c0_i32_0 : i32, i32, i32
  }
  func.func @transform_9(%arg0: i32) -> (i32, i32, i32) {
    %c0_i32 = arith.constant 0 : i32
    %c0_i32_0 = arith.constant 0 : i32
    %c0_i32_1 = arith.constant 0 : i32
    return %arg0, %c0_i32, %c0_i32_0 : i32, i32, i32
  }
  func.func @transform_10(%arg0: i32) -> (i32, i32, i32) {
    %c0_i32 = arith.constant 0 : i32
    %c0_i32_0 = arith.constant 0 : i32
    %c0_i32_1 = arith.constant 0 : i32
    return %arg0, %c0_i32, %c0_i32_0 : i32, i32, i32
  }
  func.func @transform_11(%arg0: i32) -> (i32, i32, i32) {
    %c0_i32 = arith.constant 0 : i32
    %c0_i32_0 = arith.constant 0 : i32
    %c0_i32_1 = arith.constant 0 : i32
    return %arg0, %c0_i32, %c0_i32_0 : i32, i32, i32
  }
  func.func @transform_12(%arg0: i32) -> (i32, i32, i32) {
    %c0_i32 = arith.constant 0 : i32
    %c0_i32_0 = arith.constant 0 : i32
    %c0_i32_1 = arith.constant 0 : i32
    return %arg0, %c0_i32, %c0_i32_0 : i32, i32, i32
  }
  func.func @transform_13(%arg0: i32) -> (i32, i32, i32) {
    %c0_i32 = arith.constant 0 : i32
    %c0_i32_0 = arith.constant 0 : i32
    %c0_i32_1 = arith.constant 0 : i32
    return %arg0, %c0_i32, %c0_i32_0 : i32, i32, i32
  }
  func.func @transform_14(%arg0: i32) -> (i32, i32, i32) {
    %c0_i32 = arith.constant 0 : i32
    %c0_i32_0 = arith.constant 0 : i32
    %c0_i32_1 = arith.constant 0 : i32
    return %arg0, %c0_i32, %c0_i32_0 : i32, i32, i32
  }
  func.func @transform_15(%arg0: i32) -> (i32, i32, i32) {
    %c0_i32 = arith.constant 0 : i32
    %c0_i32_0 = arith.constant 0 : i32
    %c0_i32_1 = arith.constant 0 : i32
    return %arg0, %c0_i32, %c0_i32_0 : i32, i32, i32
  }
  func.func @transform_16(%arg0: i32) -> (i32, i32, i32) {
    %c0_i32 = arith.constant 0 : i32
    %c0_i32_0 = arith.constant 0 : i32
    %c0_i32_1 = arith.constant 0 : i32
    return %arg0, %c0_i32, %c0_i32_0 : i32, i32, i32
  }
  func.func @transform_17(%arg0: i32) -> (i32, i32, i32) {
    %c0_i32 = arith.constant 0 : i32
    %c0_i32_0 = arith.constant 0 : i32
    %c0_i32_1 = arith.constant 0 : i32
    return %arg0, %c0_i32, %c0_i32_0 : i32, i32, i32
  }
  func.func @transform_18(%arg0: i32) -> (i32, i32, i32) {
    %c0_i32 = arith.constant 0 : i32
    %c0_i32_0 = arith.constant 0 : i32
    %c0_i32_1 = arith.constant 0 : i32
    %c0_i32_2 = arith.constant 0 : i32
    return %c0_i32, %c0_i32_0, %c0_i32_1 : i32, i32, i32
  }
  func.func @transform_19(%arg0: i32) -> (i32, i32, i32, i32, i32) {
    %c0_i32 = arith.constant 0 : i32
    %c0_i32_0 = arith.constant 0 : i32
    %c0_i32_1 = arith.constant 0 : i32
    %c0_i32_2 = arith.constant 0 : i32
    %c0_i32_3 = arith.constant 0 : i32
    return %arg0, %c0_i32, %c0_i32_0, %c0_i32_1, %c0_i32_2 : i32, i32, i32, i32, i32
  }
}

</mosaic_0001>

<llo_original>
// kernel: tpu_custom_call.1
$region0: #{tpu_custom_call.1}
  #allocation0 [shape = 'u32[]', space=smem, size = 0x4, offset = 0x4, fixed_abs, tag = 'smem constant byte address 0x4 - core index']
  #allocation1 [shape = 'u32[72,128]{1,0:T(1,128)}', space=vmem, size = 0x9000, scoped, tag = 'internal scratch']
  #allocation2 [shape = 'f32[16,16]{1,0:T(8,128)}', space=vmem, size = 0x2000, scoped, tag = 'scratch operand']
  %s0 = inlined_call_operand.vmem [shape: f32[2,8,32], index: 0, kind: input, shape index: {}]
  %s1 = inlined_call_operand.vmem [shape: f32[2,1,8], index: 1, kind: input, shape index: {}]
  %s2 = inlined_call_operand.vmem [shape: bf16[2,32,16], index: 2, kind: input, shape index: {}]
  %s3 = inlined_call_operand.vmem [shape: f32[2,1,16], index: 3, kind: input, shape index: {}]
  %s4 = inlined_call_operand.vmem [shape: bf16[2,32,16], index: 4, kind: input, shape index: {}]
  %s5 = inlined_call_operand.vmem [shape: f32[2,1,16], index: 5, kind: input, shape index: {}]
  %s6 = inlined_call_operand.vmem [shape: bf16[2,32,16], index: 6, kind: input, shape index: {}]
  %s7 = inlined_call_operand.vmem [shape: f32[2,1,16], index: 7, kind: input, shape index: {}]
  %s8 = inlined_call_operand.vmem [shape: bf16[2,16,32], index: 8, kind: input, shape index: {}]
  %s9 = inlined_call_operand.vmem [shape: f32[2,1,32], index: 9, kind: input, shape index: {}]
  %s10 = inlined_call_operand.vmem [shape: f32[2,1,32], index: 10, kind: input, shape index: {}]
  %s11 = inlined_call_operand.vmem [shape: f32[2,1,32], index: 11, kind: input, shape index: {}]
  %s12 = inlined_call_operand.vmem [shape: bf16[2,32,128], index: 12, kind: input, shape index: {}]
  %s13 = inlined_call_operand.vmem [shape: f32[2,1,128], index: 13, kind: input, shape index: {}]
  %s14 = inlined_call_operand.vmem [shape: bf16[2,128,32], index: 14, kind: input, shape index: {}]
  %s15 = inlined_call_operand.vmem [shape: f32[2,1,32], index: 15, kind: input, shape index: {}]
  %s16 = inlined_call_operand.vmem [shape: f32[2,1,32], index: 16, kind: input, shape index: {}]
  %s17 = inlined_call_operand.vmem [shape: f32[2,1,32], index: 17, kind: input, shape index: {}]
  %s18 = inlined_call_operand.hbm [shape: f32[2,8,32], index: 18, kind: output, shape index: {0}]
  %s19 = inlined_call_operand.hbm [shape: f32[2,2,2,8,8], index: 19, kind: output, shape index: {1}]
  %20 = xla_tuple %s18, %s19
  %s21 = sld [smem:[#allocation0]]
  $region117: #{tpu_custom_call.1} parent=0
    _
  %s23 = ssub.s32 1, %s21
  %s24 = scalar_select 0, %s23, %s21
  $region1: #{tpu_custom_call.1} parent=0
    #allocation3 [shape = 'u8[8192]{0}', space=vmem, size = 0x2000, scoped, tag = 'output window, operand 0, single buffered']
    #allocation4 [shape = 's32[2]{0}', space=sflag, size = 0x8, scoped, tag = 'scoped memory for tpu_custom_call.1']
    #allocation5 [shape = 'u8[32768]{0}', space=vmem, size = 0x8000, scoped, tag = 'output window, operand 1']
    #allocation6 [shape = 's32[2]{0}', space=sflag, size = 0x8, scoped, tag = 'scoped memory for tpu_custom_call.1']
    %25 = vsyncpa [#allocation4], 0
    %26 = vsyncpa [#allocation6], 0
    %s27 = scalar_lea.sflag [#allocation6], 1
    %28 = vsyncpa %s27, 0
    loop: start=0, step=1, limit=4
    $region2: #{tpu_custom_call.1} parent=1 // loop_pre_header
      _
    $region3: #{tpu_custom_call.1} parent=1 // loop_header
      %s30 = sphi 0, %s34
      %p31 = scmp.ge.s32.totalorder %s30, 4
      %s38 = sphi 0, %s38
      %s40 = sphi 0, %s38
      %s41 = sphi 0, %s40
      %s55 = sphi 0, %s41
      %s59 = sphi 0, %s59
      %s61 = sphi 0, %s59
      %s62 = sphi 0, %s61
      %s76 = sphi 0, %s62
      %s82 = sphi 0, %s84
      %s85 = sphi 0, %s82
      %s86 = sphi 0, %s85
      %s102 = sphi 0, %s86
      %s108 = sphi 0, %s110
      %s111 = sphi 0, %s108
      %s112 = sphi 0, %s111
      %s128 = sphi 0, %s112
      %s134 = sphi 0, %s136
      %s137 = sphi 0, %s134
      %s138 = sphi 0, %s137
      %s154 = sphi 0, %s138
      %s160 = sphi 0, %s162
      %s163 = sphi 0, %s160
      %s164 = sphi 0, %s163
      %s180 = sphi 0, %s164
      %s186 = sphi 0, %s188
      %s189 = sphi 0, %s186
      %s190 = sphi 0, %s189
      %s206 = sphi 0, %s190
      %s212 = sphi 0, %s214
      %s215 = sphi 0, %s212
      %s216 = sphi 0, %s215
      %s232 = sphi 0, %s216
      %s238 = sphi 0, %s240
      %s241 = sphi 0, %s238
      %s242 = sphi 0, %s241
      %s258 = sphi 0, %s242
      %s264 = sphi 0, %s266
      %s267 = sphi 0, %s264
      %s268 = sphi 0, %s267
      %s284 = sphi 0, %s268
      %s290 = sphi 0, %s292
      %s293 = sphi 0, %s290
      %s294 = sphi 0, %s293
      %s310 = sphi 0, %s294
      %s316 = sphi 0, %s318
      %s319 = sphi 0, %s316
      %s320 = sphi 0, %s319
      %s336 = sphi 0, %s320
      %s342 = sphi 0, %s344
      %s345 = sphi 0, %s342
      %s346 = sphi 0, %s345
      %s362 = sphi 0, %s346
      %s368 = sphi 0, %s370
      %s371 = sphi 0, %s368
      %s372 = sphi 0, %s371
      %s388 = sphi 0, %s372
      %s394 = sphi 0, %s396
      %s397 = sphi 0, %s394
      %s398 = sphi 0, %s397
      %s414 = sphi 0, %s398
      %s420 = sphi 0, %s422
      %s423 = sphi 0, %s420
      %s424 = sphi 0, %s423
      %s440 = sphi 0, %s424
      %s446 = sphi 0, %s448
      %s449 = sphi 0, %s446
      %s450 = sphi 0, %s449
      %s466 = sphi 0, %s450
      %s472 = sphi 0, %s474
      %s475 = sphi 0, %s472
      %s476 = sphi 0, %s475
      %s492 = sphi 0, %s476
      %s496 = sphi 0, %s496
      %s498 = sphi 0, %s496
      %s499 = sphi 0, %s498
      %s513 = sphi 0, %s499
      %s519 = sphi 0, %s521
      %s522 = sphi 0, %s519
      %s523 = sphi 0, %s522
      %s539 = sphi 0, %s523
    $region4: #{tpu_custom_call.1} parent=1 // loop_header_branch
      %33 = sbr.rel (%p31) target = $region8
    $region5: #{tpu_custom_call.1} parent=1 // loop_body
      %s35 = ssub.s32 %s30, 1
      %s36 = ssub.s32 %s30, 2
      %s37 = sadd.s32 %s30, 1
      %s39 = sadd.s32 %s38, 1
      %p42 = scmp.eq.s32.totalorder %s30, 1
      %p43 = scmp.ne.s32.totalorder %s38, %s40
      %p44 = scmp.eq.s32.totalorder %s30, 0
      %p45 = por %p43, %p44
      %p46 = scmp.ne.s32.totalorder %s38, %s40
      %p47 = scmp.eq.s32.totalorder %s35, 1
      %p48 = por %p46, %p47
      %p49 = scmp.ne.s32.totalorder %s40, %s41
      %p50 = scmp.eq.s32.totalorder %s35, 0
      %p51 = por %p49, %p50
      %p52 = scmp.ne.s32.totalorder %s40, %s41
      %p53 = scmp.eq.s32.totalorder %s36, 1
      %p54 = por %p52, %p53
      %p56 = scmp.ne.s32.totalorder %s41, %s55
      %p57 = scmp.eq.s32.totalorder %s36, 0
      %p58 = por %p56, %p57
      %s60 = sadd.s32 %s59, 1
      %p63 = scmp.eq.s32.totalorder %s30, 1
      %p64 = scmp.ne.s32.totalorder %s59, %s61
      %p65 = scmp.eq.s32.totalorder %s30, 0
      %p66 = por %p64, %p65
      %p67 = scmp.ne.s32.totalorder %s59, %s61
      %p68 = scmp.eq.s32.totalorder %s35, 1
      %p69 = por %p67, %p68
      %p70 = scmp.ne.s32.totalorder %s61, %s62
      %p71 = scmp.eq.s32.totalorder %s35, 0
      %p72 = por %p70, %p71
      %p73 = scmp.ne.s32.totalorder %s61, %s62
      %p74 = scmp.eq.s32.totalorder %s36, 1
      %p75 = por %p73, %p74
      %p77 = scmp.ne.s32.totalorder %s62, %s76
      %p78 = scmp.eq.s32.totalorder %s36, 0
      %p79 = por %p77, %p78
      %s80 = ssub.s32 %s30, %s37
      %p81 = scmp.eq.s32.totalorder %s80, 0
      %s83 = sadd.s32 %s82, 1
      %s84 = scalar_select %p81, %s82, %s83
      %p87 = pneg %p81
      %p88 = scmp.eq.s32.totalorder %s30, 1
      %p89 = por %p87, %p88
      %p90 = scmp.ne.s32.totalorder %s82, %s85
      %p91 = scmp.eq.s32.totalorder %s30, 0
      %p92 = por %p90, %p91
      %p93 = scmp.ne.s32.totalorder %s82, %s85
      %p94 = scmp.eq.s32.totalorder %s35, 1
      %p95 = por %p93, %p94
      %p96 = scmp.ne.s32.totalorder %s85, %s86
      %p97 = scmp.eq.s32.totalorder %s35, 0
      %p98 = por %p96, %p97
      %p99 = scmp.ne.s32.totalorder %s85, %s86
      %p100 = scmp.eq.s32.totalorder %s36, 1
      %p101 = por %p99, %p100
      %p103 = scmp.ne.s32.totalorder %s86, %s102
      %p104 = scmp.eq.s32.totalorder %s36, 0
      %p105 = por %p103, %p104
      %s106 = ssub.s32 %s30, %s37
      %p107 = scmp.eq.s32.totalorder %s106, 0
      %s109 = sadd.s32 %s108, 1
      %s110 = scalar_select %p107, %s108, %s109
      %p113 = pneg %p107
      %p114 = scmp.eq.s32.totalorder %s30, 1
      %p115 = por %p113, %p114
      %p116 = scmp.ne.s32.totalorder %s108, %s111
      %p117 = scmp.eq.s32.totalorder %s30, 0
      %p118 = por %p116, %p117
      %p119 = scmp.ne.s32.totalorder %s108, %s111
      %p120 = scmp.eq.s32.totalorder %s35, 1
      %p121 = por %p119, %p120
      %p122 = scmp.ne.s32.totalorder %s111, %s112
      %p123 = scmp.eq.s32.totalorder %s35, 0
      %p124 = por %p122, %p123
      %p125 = scmp.ne.s32.totalorder %s111, %s112
      %p126 = scmp.eq.s32.totalorder %s36, 1
      %p127 = por %p125, %p126
      %p129 = scmp.ne.s32.totalorder %s112, %s128
      %p130 = scmp.eq.s32.totalorder %s36, 0
      %p131 = por %p129, %p130
      %s132 = ssub.s32 %s30, %s37
      %p133 = scmp.eq.s32.totalorder %s132, 0
      %s135 = sadd.s32 %s134, 1
      %s136 = scalar_select %p133, %s134, %s135
      %p139 = pneg %p133
      %p140 = scmp.eq.s32.totalorder %s30, 1
      %p141 = por %p139, %p140
      %p142 = scmp.ne.s32.totalorder %s134, %s137
      %p143 = scmp.eq.s32.totalorder %s30, 0
      %p144 = por %p142, %p143
      %p145 = scmp.ne.s32.totalorder %s134, %s137
      %p146 = scmp.eq.s32.totalorder %s35, 1
      %p147 = por %p145, %p146
      %p148 = scmp.ne.s32.totalorder %s137, %s138
      %p149 = scmp.eq.s32.totalorder %s35, 0
      %p150 = por %p148, %p149
      %p151 = scmp.ne.s32.totalorder %s137, %s138
      %p152 = scmp.eq.s32.totalorder %s36, 1
      %p153 = por %p151, %p152
      %p155 = scmp.ne.s32.totalorder %s138, %s154
      %p156 = scmp.eq.s32.totalorder %s36, 0
      %p157 = por %p155, %p156
      %s158 = ssub.s32 %s30, %s37
      %p159 = scmp.eq.s32.totalorder %s158, 0
      %s161 = sadd.s32 %s160, 1
      %s162 = scalar_select %p159, %s160, %s161
      %p165 = pneg %p159
      %p166 = scmp.eq.s32.totalorder %s30, 1
      %p167 = por %p165, %p166
      %p168 = scmp.ne.s32.totalorder %s160, %s163
      %p169 = scmp.eq.s32.totalorder %s30, 0
      %p170 = por %p168, %p169
      %p171 = scmp.ne.s32.totalorder %s160, %s163
      %p172 = scmp.eq.s32.totalorder %s35, 1
      %p173 = por %p171, %p172
      %p174 = scmp.ne.s32.totalorder %s163, %s164
      %p175 = scmp.eq.s32.totalorder %s35, 0
      %p176 = por %p174, %p175
      %p177 = scmp.ne.s32.totalorder %s163, %s164
      %p178 = scmp.eq.s32.totalorder %s36, 1
      %p179 = por %p177, %p178
      %p181 = scmp.ne.s32.totalorder %s164, %s180
      %p182 = scmp.eq.s32.totalorder %s36, 0
      %p183 = por %p181, %p182
      %s184 = ssub.s32 %s30, %s37
      %p185 = scmp.eq.s32.totalorder %s184, 0
      %s187 = sadd.s32 %s186, 1
      %s188 = scalar_select %p185, %s186, %s187
      %p191 = pneg %p185
      %p192 = scmp.eq.s32.totalorder %s30, 1
      %p193 = por %p191, %p192
      %p194 = scmp.ne.s32.totalorder %s186, %s189
      %p195 = scmp.eq.s32.totalorder %s30, 0
      %p196 = por %p194, %p195
      %p197 = scmp.ne.s32.totalorder %s186, %s189
      %p198 = scmp.eq.s32.totalorder %s35, 1
      %p199 = por %p197, %p198
      %p200 = scmp.ne.s32.totalorder %s189, %s190
      %p201 = scmp.eq.s32.totalorder %s35, 0
      %p202 = por %p200, %p201
      %p203 = scmp.ne.s32.totalorder %s189, %s190
      %p204 = scmp.eq.s32.totalorder %s36, 1
      %p205 = por %p203, %p204
      %p207 = scmp.ne.s32.totalorder %s190, %s206
      %p208 = scmp.eq.s32.totalorder %s36, 0
      %p209 = por %p207, %p208
      %s210 = ssub.s32 %s30, %s37
      %p211 = scmp.eq.s32.totalorder %s210, 0
      %s213 = sadd.s32 %s212, 1
      %s214 = scalar_select %p211, %s212, %s213
      %p217 = pneg %p211
      %p218 = scmp.eq.s32.totalorder %s30, 1
      %p219 = por %p217, %p218
      %p220 = scmp.ne.s32.totalorder %s212, %s215
      %p221 = scmp.eq.s32.totalorder %s30, 0
      %p222 = por %p220, %p221
      %p223 = scmp.ne.s32.totalorder %s212, %s215
      %p224 = scmp.eq.s32.totalorder %s35, 1
      %p225 = por %p223, %p224
      %p226 = scmp.ne.s32.totalorder %s215, %s216
      %p227 = scmp.eq.s32.totalorder %s35, 0
      %p228 = por %p226, %p227
      %p229 = scmp.ne.s32.totalorder %s215, %s216
      %p230 = scmp.eq.s32.totalorder %s36, 1
      %p231 = por %p229, %p230
      %p233 = scmp.ne.s32.totalorder %s216, %s232
      %p234 = scmp.eq.s32.totalorder %s36, 0
      %p235 = por %p233, %p234
      %s236 = ssub.s32 %s30, %s37
      %p237 = scmp.eq.s32.totalorder %s236, 0
      %s239 = sadd.s32 %s238, 1
      %s240 = scalar_select %p237, %s238, %s239
      %p243 = pneg %p237
      %p244 = scmp.eq.s32.totalorder %s30, 1
      %p245 = por %p243, %p244
      %p246 = scmp.ne.s32.totalorder %s238, %s241
      %p247 = scmp.eq.s32.totalorder %s30, 0
      %p248 = por %p246, %p247
      %p249 = scmp.ne.s32.totalorder %s238, %s241
      %p250 = scmp.eq.s32.totalorder %s35, 1
      %p251 = por %p249, %p250
      %p252 = scmp.ne.s32.totalorder %s241, %s242
      %p253 = scmp.eq.s32.totalorder %s35, 0
      %p254 = por %p252, %p253
      %p255 = scmp.ne.s32.totalorder %s241, %s242
      %p256 = scmp.eq.s32.totalorder %s36, 1
      %p257 = por %p255, %p256
      %p259 = scmp.ne.s32.totalorder %s242, %s258
      %p260 = scmp.eq.s32.totalorder %s36, 0
      %p261 = por %p259, %p260
      %s262 = ssub.s32 %s30, %s37
      %p263 = scmp.eq.s32.totalorder %s262, 0
      %s265 = sadd.s32 %s264, 1
      %s266 = scalar_select %p263, %s264, %s265
      %p269 = pneg %p263
      %p270 = scmp.eq.s32.totalorder %s30, 1
      %p271 = por %p269, %p270
      %p272 = scmp.ne.s32.totalorder %s264, %s267
      %p273 = scmp.eq.s32.totalorder %s30, 0
      %p274 = por %p272, %p273
      %p275 = scmp.ne.s32.totalorder %s264, %s267
      %p276 = scmp.eq.s32.totalorder %s35, 1
      %p277 = por %p275, %p276
      %p278 = scmp.ne.s32.totalorder %s267, %s268
      %p279 = scmp.eq.s32.totalorder %s35, 0
      %p280 = por %p278, %p279
      %p281 = scmp.ne.s32.totalorder %s267, %s268
      %p282 = scmp.eq.s32.totalorder %s36, 1
      %p283 = por %p281, %p282
      %p285 = scmp.ne.s32.totalorder %s268, %s284
      %p286 = scmp.eq.s32.totalorder %s36, 0
      %p287 = por %p285, %p286
      %s288 = ssub.s32 %s30, %s37
      %p289 = scmp.eq.s32.totalorder %s288, 0
      %s291 = sadd.s32 %s290, 1
      %s292 = scalar_select %p289, %s290, %s291
      %p295 = pneg %p289
      %p296 = scmp.eq.s32.totalorder %s30, 1
      %p297 = por %p295, %p296
      %p298 = scmp.ne.s32.totalorder %s290, %s293
      %p299 = scmp.eq.s32.totalorder %s30, 0
      %p300 = por %p298, %p299
      %p301 = scmp.ne.s32.totalorder %s290, %s293
      %p302 = scmp.eq.s32.totalorder %s35, 1
      %p303 = por %p301, %p302
      %p304 = scmp.ne.s32.totalorder %s293, %s294
      %p305 = scmp.eq.s32.totalorder %s35, 0
      %p306 = por %p304, %p305
      %p307 = scmp.ne.s32.totalorder %s293, %s294
      %p308 = scmp.eq.s32.totalorder %s36, 1
      %p309 = por %p307, %p308
      %p311 = scmp.ne.s32.totalorder %s294, %s310
      %p312 = scmp.eq.s32.totalorder %s36, 0
      %p313 = por %p311, %p312
      %s314 = ssub.s32 %s30, %s37
      %p315 = scmp.eq.s32.totalorder %s314, 0
      %s317 = sadd.s32 %s316, 1
      %s318 = scalar_select %p315, %s316, %s317
      %p321 = pneg %p315
      %p322 = scmp.eq.s32.totalorder %s30, 1
      %p323 = por %p321, %p322
      %p324 = scmp.ne.s32.totalorder %s316, %s319
      %p325 = scmp.eq.s32.totalorder %s30, 0
      %p326 = por %p324, %p325
      %p327 = scmp.ne.s32.totalorder %s316, %s319
      %p328 = scmp.eq.s32.totalorder %s35, 1
      %p329 = por %p327, %p328
      %p330 = scmp.ne.s32.totalorder %s319, %s320
      %p331 = scmp.eq.s32.totalorder %s35, 0
      %p332 = por %p330, %p331
      %p333 = scmp.ne.s32.totalorder %s319, %s320
      %p334 = scmp.eq.s32.totalorder %s36, 1
      %p335 = por %p333, %p334
      %p337 = scmp.ne.s32.totalorder %s320, %s336
      %p338 = scmp.eq.s32.totalorder %s36, 0
      %p339 = por %p337, %p338
      %s340 = ssub.s32 %s30, %s37
      %p341 = scmp.eq.s32.totalorder %s340, 0
      %s343 = sadd.s32 %s342, 1
      %s344 = scalar_select %p341, %s342, %s343
      %p347 = pneg %p341
      %p348 = scmp.eq.s32.totalorder %s30, 1
      %p349 = por %p347, %p348
      %p350 = scmp.ne.s32.totalorder %s342, %s345
      %p351 = scmp.eq.s32.totalorder %s30, 0
      %p352 = por %p350, %p351
      %p353 = scmp.ne.s32.totalorder %s342, %s345
      %p354 = scmp.eq.s32.totalorder %s35, 1
      %p355 = por %p353, %p354
      %p356 = scmp.ne.s32.totalorder %s345, %s346
      %p357 = scmp.eq.s32.totalorder %s35, 0
      %p358 = por %p356, %p357
      %p359 = scmp.ne.s32.totalorder %s345, %s346
      %p360 = scmp.eq.s32.totalorder %s36, 1
      %p361 = por %p359, %p360
      %p363 = scmp.ne.s32.totalorder %s346, %s362
      %p364 = scmp.eq.s32.totalorder %s36, 0
      %p365 = por %p363, %p364
      %s366 = ssub.s32 %s30, %s37
      %p367 = scmp.eq.s32.totalorder %s366, 0
      %s369 = sadd.s32 %s368, 1
      %s370 = scalar_select %p367, %s368, %s369
      %p373 = pneg %p367
      %p374 = scmp.eq.s32.totalorder %s30, 1
      %p375 = por %p373, %p374
      %p376 = scmp.ne.s32.totalorder %s368, %s371
      %p377 = scmp.eq.s32.totalorder %s30, 0
      %p378 = por %p376, %p377
      %p379 = scmp.ne.s32.totalorder %s368, %s371
      %p380 = scmp.eq.s32.totalorder %s35, 1
      %p381 = por %p379, %p380
      %p382 = scmp.ne.s32.totalorder %s371, %s372
      %p383 = scmp.eq.s32.totalorder %s35, 0
      %p384 = por %p382, %p383
      %p385 = scmp.ne.s32.totalorder %s371, %s372
      %p386 = scmp.eq.s32.totalorder %s36, 1
      %p387 = por %p385, %p386
      %p389 = scmp.ne.s32.totalorder %s372, %s388
      %p390 = scmp.eq.s32.totalorder %s36, 0
      %p391 = por %p389, %p390
      %s392 = ssub.s32 %s30, %s37
      %p393 = scmp.eq.s32.totalorder %s392, 0
      %s395 = sadd.s32 %s394, 1
      %s396 = scalar_select %p393, %s394, %s395
      %p399 = pneg %p393
      %p400 = scmp.eq.s32.totalorder %s30, 1
      %p401 = por %p399, %p400
      %p402 = scmp.ne.s32.totalorder %s394, %s397
      %p403 = scmp.eq.s32.totalorder %s30, 0
      %p404 = por %p402, %p403
      %p405 = scmp.ne.s32.totalorder %s394, %s397
      %p406 = scmp.eq.s32.totalorder %s35, 1
      %p407 = por %p405, %p406
      %p408 = scmp.ne.s32.totalorder %s397, %s398
      %p409 = scmp.eq.s32.totalorder %s35, 0
      %p410 = por %p408, %p409
      %p411 = scmp.ne.s32.totalorder %s397, %s398
      %p412 = scmp.eq.s32.totalorder %s36, 1
      %p413 = por %p411, %p412
      %p415 = scmp.ne.s32.totalorder %s398, %s414
      %p416 = scmp.eq.s32.totalorder %s36, 0
      %p417 = por %p415, %p416
      %s418 = ssub.s32 %s30, %s37
      %p419 = scmp.eq.s32.totalorder %s418, 0
      %s421 = sadd.s32 %s420, 1
      %s422 = scalar_select %p419, %s420, %s421
      %p425 = pneg %p419
      %p426 = scmp.eq.s32.totalorder %s30, 1
      %p427 = por %p425, %p426
      %p428 = scmp.ne.s32.totalorder %s420, %s423
      %p429 = scmp.eq.s32.totalorder %s30, 0
      %p430 = por %p428, %p429
      %p431 = scmp.ne.s32.totalorder %s420, %s423
      %p432 = scmp.eq.s32.totalorder %s35, 1
      %p433 = por %p431, %p432
      %p434 = scmp.ne.s32.totalorder %s423, %s424
      %p435 = scmp.eq.s32.totalorder %s35, 0
      %p436 = por %p434, %p435
      %p437 = scmp.ne.s32.totalorder %s423, %s424
      %p438 = scmp.eq.s32.totalorder %s36, 1
      %p439 = por %p437, %p438
      %p441 = scmp.ne.s32.totalorder %s424, %s440
      %p442 = scmp.eq.s32.totalorder %s36, 0
      %p443 = por %p441, %p442
      %s444 = ssub.s32 %s30, %s37
      %p445 = scmp.eq.s32.totalorder %s444, 0
      %s447 = sadd.s32 %s446, 1
      %s448 = scalar_select %p445, %s446, %s447
      %p451 = pneg %p445
      %p452 = scmp.eq.s32.totalorder %s30, 1
      %p453 = por %p451, %p452
      %p454 = scmp.ne.s32.totalorder %s446, %s449
      %p455 = scmp.eq.s32.totalorder %s30, 0
      %p456 = por %p454, %p455
      %p457 = scmp.ne.s32.totalorder %s446, %s449
      %p458 = scmp.eq.s32.totalorder %s35, 1
      %p459 = por %p457, %p458
      %p460 = scmp.ne.s32.totalorder %s449, %s450
      %p461 = scmp.eq.s32.totalorder %s35, 0
      %p462 = por %p460, %p461
      %p463 = scmp.ne.s32.totalorder %s449, %s450
      %p464 = scmp.eq.s32.totalorder %s36, 1
      %p465 = por %p463, %p464
      %p467 = scmp.ne.s32.totalorder %s450, %s466
      %p468 = scmp.eq.s32.totalorder %s36, 0
      %p469 = por %p467, %p468
      %s470 = ssub.s32 %s30, %s37
      %p471 = scmp.eq.s32.totalorder %s470, 0
      %s473 = sadd.s32 %s472, 1
      %s474 = scalar_select %p471, %s472, %s473
      %p477 = pneg %p471
      %p478 = scmp.eq.s32.totalorder %s30, 1
      %p479 = por %p477, %p478
      %p480 = scmp.ne.s32.totalorder %s472, %s475
      %p481 = scmp.eq.s32.totalorder %s30, 0
      %p482 = por %p480, %p481
      %p483 = scmp.ne.s32.totalorder %s472, %s475
      %p484 = scmp.eq.s32.totalorder %s35, 1
      %p485 = por %p483, %p484
      %p486 = scmp.ne.s32.totalorder %s475, %s476
      %p487 = scmp.eq.s32.totalorder %s35, 0
      %p488 = por %p486, %p487
      %p489 = scmp.ne.s32.totalorder %s475, %s476
      %p490 = scmp.eq.s32.totalorder %s36, 1
      %p491 = por %p489, %p490
      %p493 = scmp.ne.s32.totalorder %s476, %s492
      %p494 = scmp.eq.s32.totalorder %s36, 0
      %p495 = por %p493, %p494
      %s497 = sadd.s32 %s496, 1
      %p500 = scmp.eq.s32.totalorder %s30, 1
      %p501 = scmp.ne.s32.totalorder %s496, %s498
      %p502 = scmp.eq.s32.totalorder %s30, 0
      %p503 = por %p501, %p502
      %p504 = scmp.ne.s32.totalorder %s496, %s498
      %p505 = scmp.eq.s32.totalorder %s35, 1
      %p506 = por %p504, %p505
      %p507 = scmp.ne.s32.totalorder %s498, %s499
      %p508 = scmp.eq.s32.totalorder %s35, 0
      %p509 = por %p507, %p508
      %p510 = scmp.ne.s32.totalorder %s498, %s499
      %p511 = scmp.eq.s32.totalorder %s36, 1
      %p512 = por %p510, %p511
      %p514 = scmp.ne.s32.totalorder %s499, %s513
      %p515 = scmp.eq.s32.totalorder %s36, 0
      %p516 = por %p514, %p515
      %s517 = ssub.s32 %s30, %s37
      %p518 = scmp.eq.s32.totalorder %s517, 0
      %s520 = sadd.s32 %s519, 1
      %s521 = scalar_select %p518, %s519, %s520
      %p524 = pneg %p518
      %p525 = scmp.eq.s32.totalorder %s30, 1
      %p526 = por %p524, %p525
      %p527 = scmp.ne.s32.totalorder %s519, %s522
      %p528 = scmp.eq.s32.totalorder %s30, 0
      %p529 = por %p527, %p528
      %p530 = scmp.ne.s32.totalorder %s519, %s522
      %p531 = scmp.eq.s32.totalorder %s35, 1
      %p532 = por %p530, %p531
      %p533 = scmp.ne.s32.totalorder %s522, %s523
      %p534 = scmp.eq.s32.totalorder %s35, 0
      %p535 = por %p533, %p534
      %p536 = scmp.ne.s32.totalorder %s522, %s523
      %p537 = scmp.eq.s32.totalorder %s36, 1
      %p538 = por %p536, %p537
      %p540 = scmp.ne.s32.totalorder %s523, %s539
      %p541 = scmp.eq.s32.totalorder %s36, 0
      %p542 = por %p540, %p541
      %p543 = scmp.le.s32.totalorder 1, %s30
      %p544 = scmp.lt.s32.totalorder %s30, 3
      %p545 = pnand %p543, %p544
      %p546 = pneg %p545
      // Predicated region
      $region9: #{tpu_custom_call.1} parent=5 // pred_check
        _
      $region10: #{tpu_custom_call.1} parent=5 // pred_check_branch
        %548 = sbr.rel (%p545) target = $region12
      $region11: #{tpu_custom_call.1} parent=5 // pred_region
        %s549 = ssub.s32 %s30, 1
        // Predicated region
        $region13: #{tpu_custom_call.1} parent=11 // pred_check
          %p550 = pneg %p51
        $region14: #{tpu_custom_call.1} parent=11 // pred_check_branch
          %552 = sbr.rel (%p550) target = $region16
        $region15: #{tpu_custom_call.1} parent=11 // pred_region
          _
        $region16: #{tpu_custom_call.1} parent=11 // pred_fallthru
          _
        // Predicated region
        $region17: #{tpu_custom_call.1} parent=11 // pred_check
          %p553 = pneg %p72
        $region18: #{tpu_custom_call.1} parent=11 // pred_check_branch
          %555 = sbr.rel (%p553) target = $region20
        $region19: #{tpu_custom_call.1} parent=11 // pred_region
          _
        $region20: #{tpu_custom_call.1} parent=11 // pred_fallthru
          _
      $region12: #{tpu_custom_call.1} parent=5 // pred_fallthru
        _
      %p556 = scmp.lt.s32.totalorder %s30, 2
      // Predicated region
      $region21: #{tpu_custom_call.1} parent=5 // pred_check
        %p557 = pneg %p556
      $region22: #{tpu_custom_call.1} parent=5 // pred_check_branch
        %559 = sbr.rel (%p557) target = $region24
      $region23: #{tpu_custom_call.1} parent=5 // pred_region
        // Predicated region
        $region25: #{tpu_custom_call.1} parent=23 // pred_check
          %p560 = pneg %p92
        $region26: #{tpu_custom_call.1} parent=23 // pred_check_branch
          %562 = sbr.rel (%p560) target = $region28
        $region27: #{tpu_custom_call.1} parent=23 // pred_region
          %p563 = scmp.lt.s32.totalorder %s30, 1
          %s564 = scalar_select %p563, %s30, 1
          %s565 = smul.addr %s564, 4
          %s566 = smul.addr %s565, 4
          %s567 = scalar_lea.vmem %s2, %s566
        $region28: #{tpu_custom_call.1} parent=23 // pred_fallthru
          _
        // Predicated region
        $region29: #{tpu_custom_call.1} parent=23 // pred_check
          %p568 = pneg %p118
        $region30: #{tpu_custom_call.1} parent=23 // pred_check_branch
          %570 = sbr.rel (%p568) target = $region32
        $region31: #{tpu_custom_call.1} parent=23 // pred_region
          %p571 = scmp.lt.s32.totalorder %s30, 1
          %s572 = scalar_select %p571, %s30, 1
          %s573 = scalar_lea.vmem %s3, %s572
        $region32: #{tpu_custom_call.1} parent=23 // pred_fallthru
          _
        // Predicated region
        $region33: #{tpu_custom_call.1} parent=23 // pred_check
          %p574 = pneg %p144
        $region34: #{tpu_custom_call.1} parent=23 // pred_check_branch
          %576 = sbr.rel (%p574) target = $region36
        $region35: #{tpu_custom_call.1} parent=23 // pred_region
          %p577 = scmp.lt.s32.totalorder %s30, 1
          %s578 = scalar_select %p577, %s30, 1
          %s579 = smul.addr %s578, 4
          %s580 = smul.addr %s579, 4
          %s581 = scalar_lea.vmem %s4, %s580
        $region36: #{tpu_custom_call.1} parent=23 // pred_fallthru
          _
        // Predicated region
        $region37: #{tpu_custom_call.1} parent=23 // pred_check
          %p582 = pneg %p170
        $region38: #{tpu_custom_call.1} parent=23 // pred_check_branch
          %584 = sbr.rel (%p582) target = $region40
        $region39: #{tpu_custom_call.1} parent=23 // pred_region
          %p585 = scmp.lt.s32.totalorder %s30, 1
          %s586 = scalar_select %p585, %s30, 1
          %s587 = scalar_lea.vmem %s5, %s586
        $region40: #{tpu_custom_call.1} parent=23 // pred_fallthru
          _
        // Predicated region
        $region41: #{tpu_custom_call.1} parent=23 // pred_check
          %p588 = pneg %p196
        $region42: #{tpu_custom_call.1} parent=23 // pred_check_branch
          %590 = sbr.rel (%p588) target = $region44
        $region43: #{tpu_custom_call.1} parent=23 // pred_region
          %p591 = scmp.lt.s32.totalorder %s30, 1
          %s592 = scalar_select %p591, %s30, 1
          %s593 = smul.addr %s592, 4
          %s594 = smul.addr %s593, 4
          %s595 = scalar_lea.vmem %s6, %s594
        $region44: #{tpu_custom_call.1} parent=23 // pred_fallthru
          _
        // Predicated region
        $region45: #{tpu_custom_call.1} parent=23 // pred_check
          %p596 = pneg %p222
        $region46: #{tpu_custom_call.1} parent=23 // pred_check_branch
          %598 = sbr.rel (%p596) target = $region48
        $region47: #{tpu_custom_call.1} parent=23 // pred_region
          %p599 = scmp.lt.s32.totalorder %s30, 1
          %s600 = scalar_select %p599, %s30, 1
          %s601 = scalar_lea.vmem %s7, %s600
        $region48: #{tpu_custom_call.1} parent=23 // pred_fallthru
          _
        // Predicated region
        $region49: #{tpu_custom_call.1} parent=23 // pred_check
          %p602 = pneg %p248
        $region50: #{tpu_custom_call.1} parent=23 // pred_check_branch
          %604 = sbr.rel (%p602) target = $region52
        $region51: #{tpu_custom_call.1} parent=23 // pred_region
          %p605 = scmp.lt.s32.totalorder %s30, 1
          %s606 = scalar_select %p605, %s30, 1
          %s607 = smul.addr %s606, 2
          %s608 = smul.addr %s607, 4
          %s609 = scalar_lea.vmem %s8, %s608
        $region52: #{tpu_custom_call.1} parent=23 // pred_fallthru
          _
        // Predicated region
        $region53: #{tpu_custom_call.1} parent=23 // pred_check
          %p610 = pneg %p274
        $region54: #{tpu_custom_call.1} parent=23 // pred_check_branch
          %612 = sbr.rel (%p610) target = $region56
        $region55: #{tpu_custom_call.1} parent=23 // pred_region
          %p613 = scmp.lt.s32.totalorder %s30, 1
          %s614 = scalar_select %p613, %s30, 1
          %s615 = scalar_lea.vmem %s9, %s614
        $region56: #{tpu_custom_call.1} parent=23 // pred_fallthru
          _
        // Predicated region
        $region57: #{tpu_custom_call.1} parent=23 // pred_check
          %p616 = pneg %p300
        $region58: #{tpu_custom_call.1} parent=23 // pred_check_branch
          %618 = sbr.rel (%p616) target = $region60
        $region59: #{tpu_custom_call.1} parent=23 // pred_region
          %p619 = scmp.lt.s32.totalorder %s30, 1
          %s620 = scalar_select %p619, %s30, 1
          %s621 = scalar_lea.vmem %s10, %s620
        $region60: #{tpu_custom_call.1} parent=23 // pred_fallthru
          _
        // Predicated region
        $region61: #{tpu_custom_call.1} parent=23 // pred_check
          %p622 = pneg %p326
        $region62: #{tpu_custom_call.1} parent=23 // pred_check_branch
          %624 = sbr.rel (%p622) target = $region64
        $region63: #{tpu_custom_call.1} parent=23 // pred_region
          %p625 = scmp.lt.s32.totalorder %s30, 1
          %s626 = scalar_select %p625, %s30, 1
          %s627 = scalar_lea.vmem %s11, %s626
        $region64: #{tpu_custom_call.1} parent=23 // pred_fallthru
          _
        // Predicated region
        $region65: #{tpu_custom_call.1} parent=23 // pred_check
          %p628 = pneg %p352
        $region66: #{tpu_custom_call.1} parent=23 // pred_check_branch
          %630 = sbr.rel (%p628) target = $region68
        $region67: #{tpu_custom_call.1} parent=23 // pred_region
          %p631 = scmp.lt.s32.totalorder %s30, 1
          %s632 = scalar_select %p631, %s30, 1
          %s633 = smul.addr %s632, 4
          %s634 = smul.addr %s633, 4
          %s635 = scalar_lea.vmem %s12, %s634
        $region68: #{tpu_custom_call.1} parent=23 // pred_fallthru
          _
        // Predicated region
        $region69: #{tpu_custom_call.1} parent=23 // pred_check
          %p636 = pneg %p378
        $region70: #{tpu_custom_call.1} parent=23 // pred_check_branch
          %638 = sbr.rel (%p636) target = $region72
        $region71: #{tpu_custom_call.1} parent=23 // pred_region
          %p639 = scmp.lt.s32.totalorder %s30, 1
          %s640 = scalar_select %p639, %s30, 1
          %s641 = scalar_lea.vmem %s13, %s640
        $region72: #{tpu_custom_call.1} parent=23 // pred_fallthru
          _
        // Predicated region
        $region73: #{tpu_custom_call.1} parent=23 // pred_check
          %p642 = pneg %p404
        $region74: #{tpu_custom_call.1} parent=23 // pred_check_branch
          %644 = sbr.rel (%p642) target = $region76
        $region75: #{tpu_custom_call.1} parent=23 // pred_region
          %p645 = scmp.lt.s32.totalorder %s30, 1
          %s646 = scalar_select %p645, %s30, 1
          %s647 = smul.addr %s646, 16
          %s648 = smul.addr %s647, 4
          %s649 = scalar_lea.vmem %s14, %s648
        $region76: #{tpu_custom_call.1} parent=23 // pred_fallthru
          _
        // Predicated region
        $region77: #{tpu_custom_call.1} parent=23 // pred_check
          %p650 = pneg %p430
        $region78: #{tpu_custom_call.1} parent=23 // pred_check_branch
          %652 = sbr.rel (%p650) target = $region80
        $region79: #{tpu_custom_call.1} parent=23 // pred_region
          %p653 = scmp.lt.s32.totalorder %s30, 1
          %s654 = scalar_select %p653, %s30, 1
          %s655 = scalar_lea.vmem %s15, %s654
        $region80: #{tpu_custom_call.1} parent=23 // pred_fallthru
          _
        // Predicated region
        $region81: #{tpu_custom_call.1} parent=23 // pred_check
          %p656 = pneg %p456
        $region82: #{tpu_custom_call.1} parent=23 // pred_check_branch
          %658 = sbr.rel (%p656) target = $region84
        $region83: #{tpu_custom_call.1} parent=23 // pred_region
          %p659 = scmp.lt.s32.totalorder %s30, 1
          %s660 = scalar_select %p659, %s30, 1
          %s661 = scalar_lea.vmem %s16, %s660
        $region84: #{tpu_custom_call.1} parent=23 // pred_fallthru
          _
        // Predicated region
        $region85: #{tpu_custom_call.1} parent=23 // pred_check
          %p662 = pneg %p482
        $region86: #{tpu_custom_call.1} parent=23 // pred_check_branch
          %664 = sbr.rel (%p662) target = $region88
        $region87: #{tpu_custom_call.1} parent=23 // pred_region
          %p665 = scmp.lt.s32.totalorder %s30, 1
          %s666 = scalar_select %p665, %s30, 1
          %s667 = scalar_lea.vmem %s17, %s666
        $region88: #{tpu_custom_call.1} parent=23 // pred_fallthru
          _
      $region24: #{tpu_custom_call.1} parent=5 // pred_fallthru
        _
      %p668 = scmp.le.s32.totalorder 1, %s30
      %p669 = scmp.lt.s32.totalorder %s30, 3
      %p670 = pnand %p668, %p669
      %p671 = pneg %p670
      // Predicated region
      $region89: #{tpu_custom_call.1} parent=5 // pred_check
        _
      $region90: #{tpu_custom_call.1} parent=5 // pred_check_branch
        %673 = sbr.rel (%p670) target = $region92
      $region91: #{tpu_custom_call.1} parent=5 // pred_region
        %s674 = ssub.s32 %s30, 1
        %p675 = pneg %p51
        %p676 = pneg %p48
        %p677 = pneg %p72
        %p678 = pneg %p69
        %p679 = scmp.lt.s32.totalorder %s35, 1
        %s680 = scalar_select %p679, %s35, 1
        %s681 = smul.addr %s680, 4
        %s682 = smul.addr %s681, 4
        %s683 = scalar_lea.vmem %s2, %s682
        %p684 = pneg %p98
        %p685 = pneg %p95
        %p686 = scmp.lt.s32.totalorder %s35, 1
        %s687 = scalar_select %p686, %s35, 1
        %s688 = scalar_lea.vmem %s3, %s687
        %p689 = pneg %p124
        %p690 = pneg %p121
        %p691 = scmp.lt.s32.totalorder %s35, 1
        %s692 = scalar_select %p691, %s35, 1
        %s693 = smul.addr %s692, 4
        %s694 = smul.addr %s693, 4
        %s695 = scalar_lea.vmem %s4, %s694
        %p696 = pneg %p150
        %p697 = pneg %p147
        %p698 = scmp.lt.s32.totalorder %s35, 1
        %s699 = scalar_select %p698, %s35, 1
        %s700 = scalar_lea.vmem %s5, %s699
        %p701 = pneg %p176
        %p702 = pneg %p173
        %p703 = scmp.lt.s32.totalorder %s35, 1
        %s704 = scalar_select %p703, %s35, 1
        %s705 = smul.addr %s704, 4
        %s706 = smul.addr %s705, 4
        %s707 = scalar_lea.vmem %s6, %s706
        %p708 = pneg %p202
        %p709 = pneg %p199
        %p710 = scmp.lt.s32.totalorder %s35, 1
        %s711 = scalar_select %p710, %s35, 1
        %s712 = scalar_lea.vmem %s7, %s711
        %p713 = pneg %p228
        %p714 = pneg %p225
        %p715 = scmp.lt.s32.totalorder %s35, 1
        %s716 = scalar_select %p715, %s35, 1
        %s717 = smul.addr %s716, 2
        %s718 = smul.addr %s717, 4
        %s719 = scalar_lea.vmem %s8, %s718
        %p720 = pneg %p254
        %p721 = pneg %p251
        %p722 = scmp.lt.s32.totalorder %s35, 1
        %s723 = scalar_select %p722, %s35, 1
        %s724 = scalar_lea.vmem %s9, %s723
        %p725 = pneg %p280
        %p726 = pneg %p277
        %p727 = scmp.lt.s32.totalorder %s35, 1
        %s728 = scalar_select %p727, %s35, 1
        %s729 = scalar_lea.vmem %s10, %s728
        %p730 = pneg %p306
        %p731 = pneg %p303
        %p732 = scmp.lt.s32.totalorder %s35, 1
        %s733 = scalar_select %p732, %s35, 1
        %s734 = scalar_lea.vmem %s11, %s733
        %p735 = pneg %p332
        %p736 = pneg %p329
        %p737 = scmp.lt.s32.totalorder %s35, 1
        %s738 = scalar_select %p737, %s35, 1
        %s739 = smul.addr %s738, 4
        %s740 = smul.addr %s739, 4
        %s741 = scalar_lea.vmem %s12, %s740
        %p742 = pneg %p358
        %p743 = pneg %p355
        %p744 = scmp.lt.s32.totalorder %s35, 1
        %s745 = scalar_select %p744, %s35, 1
        %s746 = scalar_lea.vmem %s13, %s745
        %p747 = pneg %p384
        %p748 = pneg %p381
        %p749 = scmp.lt.s32.totalorder %s35, 1
        %s750 = scalar_select %p749, %s35, 1
        %s751 = smul.addr %s750, 16
        %s752 = smul.addr %s751, 4
        %s753 = scalar_lea.vmem %s14, %s752
        %p754 = pneg %p410
        %p755 = pneg %p407
        %p756 = scmp.lt.s32.totalorder %s35, 1
        %s757 = scalar_select %p756, %s35, 1
        %s758 = scalar_lea.vmem %s15, %s757
        %p759 = pneg %p436
        %p760 = pneg %p433
        %p761 = scmp.lt.s32.totalorder %s35, 1
        %s762 = scalar_select %p761, %s35, 1
        %s763 = scalar_lea.vmem %s16, %s762
        %p764 = pneg %p462
        %p765 = pneg %p459
        %p766 = scmp.lt.s32.totalorder %s35, 1
        %s767 = scalar_select %p766, %s35, 1
        %s768 = scalar_lea.vmem %s17, %s767
        %p769 = pneg %p488
        %p770 = pneg %p485
        %p771 = pneg %p509
        %p772 = pneg %p506
        %p773 = pneg %p535
        %p774 = pneg %p532
        %s775 = sand.u32 %s522, 1
        %s776 = scalar_lea.sflag [#allocation6], %s775
        %s777 = sand.u32 %s522, 1
        %s778 = smul.addr %s777, 32
        %s779 = scalar_lea.vmem [#allocation5], %s778
        %p780 = scmp.lt.s32.totalorder %s35, 1
        %s781 = scalar_select %p780, %s35, 1
        %s782 = smul.addr %s781, 4
        %s783 = smul.addr %s782, 4
        %s784 = scalar_lea.vmem %s2, %s783
        %p785 = scmp.lt.s32.totalorder %s35, 1
        %s786 = scalar_select %p785, %s35, 1
        %s787 = scalar_lea.vmem %s3, %s786
        %p788 = scmp.lt.s32.totalorder %s35, 1
        %s789 = scalar_select %p788, %s35, 1
        %s790 = smul.addr %s789, 4
        %s791 = smul.addr %s790, 4
        %s792 = scalar_lea.vmem %s4, %s791
        %p793 = scmp.lt.s32.totalorder %s35, 1
        %s794 = scalar_select %p793, %s35, 1
        %s795 = scalar_lea.vmem %s5, %s794
        %p796 = scmp.lt.s32.totalorder %s35, 1
        %s797 = scalar_select %p796, %s35, 1
        %s798 = smul.addr %s797, 4
        %s799 = smul.addr %s798, 4
        %s800 = scalar_lea.vmem %s6, %s799
        %p801 = scmp.lt.s32.totalorder %s35, 1
        %s802 = scalar_select %p801, %s35, 1
        %s803 = scalar_lea.vmem %s7, %s802
        %p804 = scmp.lt.s32.totalorder %s35, 1
        %s805 = scalar_select %p804, %s35, 1
        %s806 = smul.addr %s805, 2
        %s807 = smul.addr %s806, 4
        %s808 = scalar_lea.vmem %s8, %s807
        %p809 = scmp.lt.s32.totalorder %s35, 1
        %s810 = scalar_select %p809, %s35, 1
        %s811 = scalar_lea.vmem %s9, %s810
        %p812 = scmp.lt.s32.totalorder %s35, 1
        %s813 = scalar_select %p812, %s35, 1
        %s814 = scalar_lea.vmem %s10, %s813
        %p815 = scmp.lt.s32.totalorder %s35, 1
        %s816 = scalar_select %p815, %s35, 1
        %s817 = scalar_lea.vmem %s11, %s816
        %p818 = scmp.lt.s32.totalorder %s35, 1
        %s819 = scalar_select %p818, %s35, 1
        %s820 = smul.addr %s819, 4
        %s821 = smul.addr %s820, 4
        %s822 = scalar_lea.vmem %s12, %s821
        %p823 = scmp.lt.s32.totalorder %s35, 1
        %s824 = scalar_select %p823, %s35, 1
        %s825 = scalar_lea.vmem %s13, %s824
        %p826 = scmp.lt.s32.totalorder %s35, 1
        %s827 = scalar_select %p826, %s35, 1
        %s828 = smul.addr %s827, 16
        %s829 = smul.addr %s828, 4
        %s830 = scalar_lea.vmem %s14, %s829
        %p831 = scmp.lt.s32.totalorder %s35, 1
        %s832 = scalar_select %p831, %s35, 1
        %s833 = scalar_lea.vmem %s15, %s832
        %p834 = scmp.lt.s32.totalorder %s35, 1
        %s835 = scalar_select %p834, %s35, 1
        %s836 = scalar_lea.vmem %s16, %s835
        %p837 = scmp.lt.s32.totalorder %s35, 1
        %s838 = scalar_select %p837, %s35, 1
        %s839 = scalar_lea.vmem %s17, %s838
        %p841 = scmp.eq.s32.totalorder %s35, 0
        // Predicated region
        $region93: #{tpu_custom_call.1} parent=91 // pred_check
          %p842 = pneg %p841
        $region94: #{tpu_custom_call.1} parent=91 // pred_check_branch
          %844 = sbr.rel (%p842) target = $region96
        $region95: #{tpu_custom_call.1} parent=91 // pred_region
          %v845 = vld [vmem:[%s0] sm:$0xff]
          %v846 = vld [vmem:[%s0 + $0x8] sm:$0xff]
          %vm847 = vcmask 261120
          %848 = vst.msk [vmem:[#allocation3] sm:$0xff] %vm847, %v845
          %849 = vst.msk [vmem:[#allocation3 + $0x8] sm:$0xff] %vm847, %v846
        $region96: #{tpu_custom_call.1} parent=91 // pred_fallthru
          _
        %v850 = vld [vmem:[#allocation3] sm:$0xff]
        %v851 = vld [vmem:[#allocation3 + $0x8] sm:$0xff]
        %v852 = vpack.c.bf16 %v851, %v850
        %v853 = vld [vmem:[%s1] sm:$0x1]
        %v854 = vld [vmem:[%s1 + $0x1] sm:$0x1]
        %v855 = vld [vmem:[%s784] sm:$0xf]
        %v856 = vld [vmem:[%s784 + $0x4] sm:$0xf]
        %v857 = vld [vmem:[%s784 + $0x8] sm:$0xf]
        %v858 = vld [vmem:[%s784 + $0xc] sm:$0xf]
        %v859 = vld [vmem:[%s787] sm:$0x1]
        %v861 = vperm.slane %v859, 0
        %v867 = vunpack.c.l.b16 %v855
        %v868 = vunpack.c.l.b16 %v856
        %v869 = vunpack.c.l.b16 %v857
        %v870 = vunpack.c.l.b16 %v858
        %v871 = vpack.c.b16 %v868, %v867
        %v872 = vpack.c.b16 %v870, %v869
        %vm875 = vcmask 261120
        %v877 = vsel %vm875, %v852, 0
        %879 = vmatpush.bf16.msra.mxu0 0
        %880 = vmatpush.bf16.msra.mxu0 0
        %881 = vmatpush.bf16.msra.mxu0 0
        %882 = vmatpush.bf16.msra.mxu0 0
        %883 = vmatpush.bf16.msra.mxu0 0
        %884 = vmatpush.bf16.msra.mxu0 0
        %885 = vmatpush.bf16.msra.mxu0 %v872
        %886 = vmatpush.bf16.msra.mxu0 %v871
        %887 = vmatmul.bf16.gmra.mxu0 %v877
        %v888 = vpop.f32.mrf.mxu0
        %v889 = vadd.f32 %v861, %v888
        %v890 = vpop.f32.mrf.mxu0
        %v891 = vadd.f32 %v861, %v890
        %892 = vdwg.mxu0
        %v893 = vld [vmem:[%s792] sm:$0xf]
        %v894 = vld [vmem:[%s792 + $0x4] sm:$0xf]
        %v895 = vld [vmem:[%s792 + $0x8] sm:$0xf]
        %v896 = vld [vmem:[%s792 + $0xc] sm:$0xf]
        %v897 = vld [vmem:[%s795] sm:$0x1]
        %v899 = vperm.slane %v897, 0
        %v905 = vunpack.c.l.b16 %v893
        %v906 = vunpack.c.l.b16 %v894
        %v907 = vunpack.c.l.b16 %v895
        %v908 = vunpack.c.l.b16 %v896
        %v909 = vpack.c.b16 %v906, %v905
        %v910 = vpack.c.b16 %v908, %v907
        %913 = vmatpush.bf16.msra.mxu0 0
        %914 = vmatpush.bf16.msra.mxu0 0
        %915 = vmatpush.bf16.msra.mxu0 0
        %916 = vmatpush.bf16.msra.mxu0 0
        %917 = vmatpush.bf16.msra.mxu0 0
        %918 = vmatpush.bf16.msra.mxu0 0
        %919 = vmatpush.bf16.msra.mxu0 %v910
        %920 = vmatpush.bf16.msra.mxu0 %v909
        %921 = vmatmul.bf16.gmra.mxu0 %v877
        %v922 = vpop.f32.mrf.mxu0
        %v923 = vadd.f32 %v899, %v922
        %v924 = vpop.f32.mrf.mxu0
        %v925 = vadd.f32 %v899, %v924
        %926 = vdwg.mxu0
        %v927 = vld [vmem:[%s800] sm:$0xf]
        %v928 = vld [vmem:[%s800 + $0x4] sm:$0xf]
        %v929 = vld [vmem:[%s800 + $0x8] sm:$0xf]
        %v930 = vld [vmem:[%s800 + $0xc] sm:$0xf]
        %v931 = vld [vmem:[%s803] sm:$0x1]
        %v933 = vperm.slane %v931, 0
        %v939 = vunpack.c.l.b16 %v927
        %v940 = vunpack.c.l.b16 %v928
        %v941 = vunpack.c.l.b16 %v929
        %v942 = vunpack.c.l.b16 %v930
        %v943 = vpack.c.b16 %v940, %v939
        %v944 = vpack.c.b16 %v942, %v941
        %947 = vmatpush.bf16.msra.mxu0 0
        %948 = vmatpush.bf16.msra.mxu0 0
        %949 = vmatpush.bf16.msra.mxu0 0
        %950 = vmatpush.bf16.msra.mxu0 0
        %951 = vmatpush.bf16.msra.mxu0 0
        %952 = vmatpush.bf16.msra.mxu0 0
        %953 = vmatpush.bf16.msra.mxu0 %v944
        %954 = vmatpush.bf16.msra.mxu0 %v943
        %955 = vmatmul.bf16.gmra.mxu0 %v877
        %v956 = vpop.f32.mrf.mxu0
        %v957 = vadd.f32 %v933, %v956
        %v958 = vpop.f32.mrf.mxu0
        %v959 = vadd.f32 %v933, %v958
        %960 = vdwg.mxu0
        %v961 = vpack.c.bf16 %v889, %v889
        %v962 = vpack.c.bf16 %v891, %v891
        %v963 = vpack.c.bf16 %v923, %v923
        %v964 = vpack.c.bf16 %v925, %v925
        %v965 = vpack.c.bf16 %v957, %v957
        %v966 = vpack.c.bf16 %v959, %v959
        %v969 = vperm.slane %v853, 0
        %v970 = vperm.slane %v854, 0
        %vm973 = vcmask 64512
        %v975 = vsel %vm973, %v961, 0
        %v978 = vsel %vm973, %v963, 0
        %980 = vmatpush.bf16.xpose.msra.mxu0 0
        %981 = vmatpush.bf16.xpose.msra.mxu0 0
        %982 = vmatpush.bf16.xpose.msra.mxu0 0
        %983 = vmatpush.bf16.xpose.msra.mxu0 0
        %984 = vmatpush.bf16.xpose.msra.mxu0 0
        %985 = vmatpush.bf16.xpose.msra.mxu0 0
        %986 = vmatpush.bf16.xpose.msra.mxu0 0
        %987 = vmatpush.bf16.xpose.msra.mxu0 %v978
        %988 = vmatmul.bf16.gmra.mxu0 %v975
        %v989 = vpop.f32.mrf.mxu0
        %v990 = vadd.f32 %v969, %v989
        %v991 = vpop.f32.mrf.mxu0
        %992 = vdwg.mxu0
        %v994 = vsel %vm973, %v962, 0
        %v997 = vsel %vm973, %v964, 0
        %999 = vmatpush.bf16.xpose.msra.mxu0 0
        %1000 = vmatpush.bf16.xpose.msra.mxu0 0
        %1001 = vmatpush.bf16.xpose.msra.mxu0 0
        %1002 = vmatpush.bf16.xpose.msra.mxu0 0
        %1003 = vmatpush.bf16.xpose.msra.mxu0 0
        %1004 = vmatpush.bf16.xpose.msra.mxu0 0
        %1005 = vmatpush.bf16.xpose.msra.mxu0 0
        %1006 = vmatpush.bf16.xpose.msra.mxu0 %v997
        %1007 = vmatmul.bf16.gmra.mxu0 %v994
        %v1008 = vpop.f32.mrf.mxu0
        %v1009 = vadd.f32 %v970, %v1008
        %v1010 = vpop.f32.mrf.mxu0
        %1011 = vdwg.mxu0
        %v1012 = vsel %vm973, %v990, -inf
        %1013 = vmax.xlane.f32.xlu0 %v1012
        %v1014 = vpop.xlane.xlu0 %1013
        %v1015 = vsel %vm973, %v1009, -inf
        %1016 = vmax.xlane.f32.xlu0 %v1015
        %v1017 = vpop.xlane.xlu0 %1016
        %v1018 = vsub.f32 %v990, %v1014
        %v1019 = vsub.f32 %v1009, %v1017
        %v1020 = vmul.f32 %v1018, 1.442695
        %v1021 = vpow.pop %v1020
        %v1022 = vmul.f32 %v1019, 1.442695
        %v1023 = vpow.pop %v1022
        %v1024 = vsel %vm973, %v1021, 0.0
        %1025 = vadd.xlane.f32.xlu0 %v1024
        %v1026 = vpop.xlane.xlu0 %1025
        %v1027 = vsel %vm973, %v1023, 0.0
        %1028 = vadd.xlane.f32.xlu0 %v1027
        %v1029 = vpop.xlane.xlu0 %1028
        %v1030 = vrcp.pop %v1026
        %v1031 = vrcp.pop %v1029
        %v1032 = vmul.f32 %v1021, %v1030
        %v1033 = vmul.f32 %v1023, %v1031
        %1034 = vst.msk [vmem:[%s779] sm:$0xff] %vm973, %v1032
        %1035 = vst.msk [vmem:[%s779 + $0x8] sm:$0xff] %vm973, %v1033
        %v1036 = vpack.c.bf16 %v1032, %v1032
        %v1037 = vpack.c.bf16 %v1033, %v1033
        %v1039 = vsel %vm973, %v1036, 0
        %vm1041 = vcmask 1043456
        %v1043 = vsel %vm1041, %v965, 0
        %1045 = vmatpush.bf16.msra.mxu0 0
        %1046 = vmatpush.bf16.msra.mxu0 0
        %1047 = vmatpush.bf16.msra.mxu0 0
        %1048 = vmatpush.bf16.msra.mxu0 0
        %1049 = vmatpush.bf16.msra.mxu0 0
        %1050 = vmatpush.bf16.msra.mxu0 0
        %1051 = vmatpush.bf16.msra.mxu0 0
        %1052 = vmatpush.bf16.msra.mxu0 %v1043
        %1053 = vmatmul.bf16.gmra.mxu0 %v1039
        %v1054 = vpop.f32.mrf.mxu0
        %v1055 = vadd.f32 0.0, %v1054
        %v1056 = vpop.f32.mrf.mxu0
        %1057 = vdwg.mxu0
        %v1059 = vsel %vm973, %v1037, 0
        %v1062 = vsel %vm1041, %v966, 0
        %1064 = vmatpush.bf16.msra.mxu0 0
        %1065 = vmatpush.bf16.msra.mxu0 0
        %1066 = vmatpush.bf16.msra.mxu0 0
        %1067 = vmatpush.bf16.msra.mxu0 0
        %1068 = vmatpush.bf16.msra.mxu0 0
        %1069 = vmatpush.bf16.msra.mxu0 0
        %1070 = vmatpush.bf16.msra.mxu0 0
        %1071 = vmatpush.bf16.msra.mxu0 %v1062
        %1072 = vmatmul.bf16.gmra.mxu0 %v1059
        %v1073 = vpop.f32.mrf.mxu0
        %v1074 = vadd.f32 0.0, %v1073
        %v1075 = vpop.f32.mrf.mxu0
        %1076 = vdwg.mxu0
        %1077 = vst.msk [vmem:[#allocation2] sm:$0xff] %vm973, %v1055
        %1078 = vst.msk [vmem:[#allocation2 + $0x8] sm:$0xff] %vm973, %v1074
        %v1080 = vunpack.c.l.b16 %v961
        %v1081 = vpack.c.b16 %v1080, %v1080
        %1082 = vrot.lane.b32.xlu0 %v1081, 120
        %v1083 = vpop.permute.xlu0 %1082
        %v1085 = vunpack.c.l.b16 %v963
        %v1086 = vpack.c.b16 %v1085, %v1085
        %1087 = vrot.lane.b32.xlu0 %v1086, 120
        %v1088 = vpop.permute.xlu0 %1087
        %v1090 = vsel %vm973, %v1083, 0
        %v1093 = vsel %vm973, %v1088, 0
        %1095 = vmatpush.bf16.xpose.msra.mxu0 0
        %1096 = vmatpush.bf16.xpose.msra.mxu0 0
        %1097 = vmatpush.bf16.xpose.msra.mxu0 0
        %1098 = vmatpush.bf16.xpose.msra.mxu0 0
        %1099 = vmatpush.bf16.xpose.msra.mxu0 0
        %1100 = vmatpush.bf16.xpose.msra.mxu0 0
        %1101 = vmatpush.bf16.xpose.msra.mxu0 0
        %1102 = vmatpush.bf16.xpose.msra.mxu0 %v1093
        %1103 = vmatmul.bf16.gmra.mxu0 %v1090
        %v1104 = vpop.f32.mrf.mxu0
        %v1105 = vadd.f32 %v969, %v1104
        %v1106 = vpop.f32.mrf.mxu0
        %1107 = vdwg.mxu0
        %v1109 = vunpack.c.l.b16 %v962
        %v1110 = vpack.c.b16 %v1109, %v1109
        %1111 = vrot.lane.b32.xlu0 %v1110, 120
        %v1112 = vpop.permute.xlu0 %1111
        %v1114 = vunpack.c.l.b16 %v964
        %v1115 = vpack.c.b16 %v1114, %v1114
        %1116 = vrot.lane.b32.xlu0 %v1115, 120
        %v1117 = vpop.permute.xlu0 %1116
        %v1119 = vsel %vm973, %v1112, 0
        %v1122 = vsel %vm973, %v1117, 0
        %1124 = vmatpush.bf16.xpose.msra.mxu0 0
        %1125 = vmatpush.bf16.xpose.msra.mxu0 0
        %1126 = vmatpush.bf16.xpose.msra.mxu0 0
        %1127 = vmatpush.bf16.xpose.msra.mxu0 0
        %1128 = vmatpush.bf16.xpose.msra.mxu0 0
        %1129 = vmatpush.bf16.xpose.msra.mxu0 0
        %1130 = vmatpush.bf16.xpose.msra.mxu0 0
        %1131 = vmatpush.bf16.xpose.msra.mxu0 %v1122
        %1132 = vmatmul.bf16.gmra.mxu0 %v1119
        %v1133 = vpop.f32.mrf.mxu0
        %v1134 = vadd.f32 %v970, %v1133
        %v1135 = vpop.f32.mrf.mxu0
        %1136 = vdwg.mxu0
        %v1137 = vsel %vm973, %v1105, -inf
        %1138 = vmax.xlane.f32.xlu0 %v1137
        %v1139 = vpop.xlane.xlu0 %1138
        %v1140 = vsel %vm973, %v1134, -inf
        %1141 = vmax.xlane.f32.xlu0 %v1140
        %v1142 = vpop.xlane.xlu0 %1141
        %v1143 = vsub.f32 %v1105, %v1139
        %v1144 = vsub.f32 %v1134, %v1142
        %v1145 = vmul.f32 %v1143, 1.442695
        %v1146 = vpow.pop %v1145
        %v1147 = vmul.f32 %v1144, 1.442695
        %v1148 = vpow.pop %v1147
        %v1149 = vsel %vm973, %v1146, 0.0
        %1150 = vadd.xlane.f32.xlu0 %v1149
        %v1151 = vpop.xlane.xlu0 %1150
        %v1152 = vsel %vm973, %v1148, 0.0
        %1153 = vadd.xlane.f32.xlu0 %v1152
        %v1154 = vpop.xlane.xlu0 %1153
        %v1155 = vrcp.pop %v1151
        %v1156 = vrcp.pop %v1154
        %v1157 = vmul.f32 %v1146, %v1155
        %v1158 = vmul.f32 %v1148, %v1156
        %s1159 = scalar_lea.vmem %s779, 16 [#allocation5]
        %1160 = vst.msk [vmem:[%s1159] sm:$0xff] %vm973, %v1157
        %1161 = vst.msk [vmem:[%s1159 + $0x8] sm:$0xff] %vm973, %v1158
        %v1162 = vpack.c.bf16 %v1157, %v1157
        %v1163 = vpack.c.bf16 %v1158, %v1158
        %v1165 = vunpack.c.l.b16 %v965
        %v1166 = vpack.c.b16 %v1165, %v1165
        %1167 = vrot.lane.b32.xlu0 %v1166, 120
        %v1168 = vpop.permute.xlu0 %1167
        %v1170 = vsel %vm973, %v1162, 0
        %v1173 = vsel %vm1041, %v1168, 0
        %1175 = vmatpush.bf16.msra.mxu0 0
        %1176 = vmatpush.bf16.msra.mxu0 0
        %1177 = vmatpush.bf16.msra.mxu0 0
        %1178 = vmatpush.bf16.msra.mxu0 0
        %1179 = vmatpush.bf16.msra.mxu0 0
        %1180 = vmatpush.bf16.msra.mxu0 0
        %1181 = vmatpush.bf16.msra.mxu0 0
        %1182 = vmatpush.bf16.msra.mxu0 %v1173
        %1183 = vmatmul.bf16.gmra.mxu0 %v1170
        %v1184 = vpop.f32.mrf.mxu0
        %v1185 = vadd.f32 0.0, %v1184
        %v1186 = vpop.f32.mrf.mxu0
        %1187 = vdwg.mxu0
        %v1189 = vunpack.c.l.b16 %v966
        %v1190 = vpack.c.b16 %v1189, %v1189
        %1191 = vrot.lane.b32.xlu0 %v1190, 120
        %v1192 = vpop.permute.xlu0 %1191
        %v1194 = vsel %vm973, %v1163, 0
        %v1197 = vsel %vm1041, %v1192, 0
        %1199 = vmatpush.bf16.msra.mxu0 0
        %1200 = vmatpush.bf16.msra.mxu0 0
        %1201 = vmatpush.bf16.msra.mxu0 0
        %1202 = vmatpush.bf16.msra.mxu0 0
        %1203 = vmatpush.bf16.msra.mxu0 0
        %1204 = vmatpush.bf16.msra.mxu0 0
        %1205 = vmatpush.bf16.msra.mxu0 0
        %1206 = vmatpush.bf16.msra.mxu0 %v1197
        %1207 = vmatmul.bf16.gmra.mxu0 %v1194
        %v1208 = vpop.f32.mrf.mxu0
        %v1209 = vadd.f32 0.0, %v1208
        %v1210 = vpop.f32.mrf.mxu0
        %1211 = vdwg.mxu0
        %1214 = vrot.lane.b32.xlu0 %v1185, 8
        %v1215 = vpop.permute.xlu0 %1214
        %1216 = vrot.lane.b32.xlu0 %v1209, 8
        %v1217 = vpop.permute.xlu0 %1216
        %vm1220 = vcmask 130112
        %1221 = vst.msk [vmem:[#allocation2] sm:$0xff] %vm1220, %v1215
        %1222 = vst.msk [vmem:[#allocation2 + $0x8] sm:$0xff] %vm1220, %v1217
        %v1223 = vld [vmem:[#allocation2] sm:$0xff]
        %v1224 = vld [vmem:[#allocation2 + $0x8] sm:$0xff]
        %v1225 = vpack.c.bf16 %v1224, %v1223
        %v1226 = vld [vmem:[%s808] sm:$0xf]
        %v1227 = vld [vmem:[%s808 + $0x4] sm:$0xf]
        %v1228 = vld [vmem:[%s811] sm:$0x1]
        %v1230 = vperm.slane %v1228, 0
        %v1234 = vunpack.c.l.b16 %v1226
        %v1235 = vunpack.c.l.b16 %v1227
        %v1236 = vpack.c.b16 %v1235, %v1234
        %vm1238 = vcmask 130048
        %v1240 = vsel %vm1238, %v1225, 0
        %1242 = vmatpush.bf16.msra.mxu0 0
        %1243 = vmatpush.bf16.msra.mxu0 0
        %1244 = vmatpush.bf16.msra.mxu0 0
        %1245 = vmatpush.bf16.msra.mxu0 0
        %1246 = vmatpush.bf16.msra.mxu0 0
        %1247 = vmatpush.bf16.msra.mxu0 0
        %1248 = vmatpush.bf16.msra.mxu0 0
        %1249 = vmatpush.bf16.msra.mxu0 %v1236
        %1250 = vmatmul.bf16.gmra.mxu0 %v1240
        %v1251 = vpop.f32.mrf.mxu0
        %v1252 = vadd.f32 %v1230, %v1251
        %v1253 = vpop.f32.mrf.mxu0
        %v1254 = vadd.f32 %v1230, %v1253
        %1255 = vdwg.mxu0
        %v1256 = vadd.f32 %v1252, %v850
        %v1257 = vadd.f32 %v1254, %v851
        %v1258 = vld [vmem:[%s814] sm:$0x1]
        %v1259 = vld [vmem:[%s817] sm:$0x1]
        %v1260 = vsel %vm875, %v1256, 0.0
        %1261 = vadd.xlane.f32.xlu0 %v1260
        %v1262 = vpop.xlane.xlu0 %1261
        %v1263 = vsel %vm875, %v1257, 0.0
        %1264 = vadd.xlane.f32.xlu0 %v1263
        %v1265 = vpop.xlane.xlu0 %1264
        %v1266 = vrcp.pop 32.0
        %v1267 = vmul.f32 32.0, %v1266
        %v1268 = vsub.f32 1.0, %v1267
        %v1269 = vmul.f32 %v1266, %v1268
        %v1270 = vadd.f32 %v1266, %v1269
        %vm1271 = vweird.f32 %v1266
        %v1272 = vsel %vm1271, %v1266, %v1270
        %v1273 = vmul.f32 %v1262, %v1272
        %v1274 = vmul.f32 %v1265, %v1272
        %v1275 = vsub.f32 %v1256, %v1273
        %v1276 = vsub.f32 %v1257, %v1274
        %v1277 = vmul.f32 %v1275, %v1275
        %v1278 = vmul.f32 %v1276, %v1276
        %v1279 = vsel %vm875, %v1277, 0.0
        %1280 = vadd.xlane.f32.xlu0 %v1279
        %v1281 = vpop.xlane.xlu0 %1280
        %v1282 = vsel %vm875, %v1278, 0.0
        %1283 = vadd.xlane.f32.xlu0 %v1282
        %v1284 = vpop.xlane.xlu0 %1283
        %v1285 = vmul.f32 %v1281, %v1272
        %v1286 = vmul.f32 %v1284, %v1272
        %v1287 = vadd.f32 %v1285, 1e-05
        %v1288 = vadd.f32 %v1286, 1e-05
        %v1289 = vrsqrt.pop %v1287
        %v1290 = vmul.f32 %v1289, %v1287
        %v1291 = vmul.f32 %v1290, %v1289
        %v1292 = vmul.f32 0.5, %v1291
        %v1293 = vsub.f32 1.5, %v1292
        %v1294 = vmul.f32 %v1289, %v1293
        %vm1295 = vweird.f32 %v1287
        %vm1296 = vweird.f32 %v1289
        %vm1297 = vmor %vm1295, %vm1296
        %v1298 = vsel %vm1297, %v1289, %v1294
        %v1299 = vrsqrt.pop %v1288
        %v1300 = vmul.f32 %v1299, %v1288
        %v1301 = vmul.f32 %v1300, %v1299
        %v1302 = vmul.f32 0.5, %v1301
        %v1303 = vsub.f32 1.5, %v1302
        %v1304 = vmul.f32 %v1299, %v1303
        %vm1305 = vweird.f32 %v1288
        %vm1306 = vweird.f32 %v1299
        %vm1307 = vmor %vm1305, %vm1306
        %v1308 = vsel %vm1307, %v1299, %v1304
        %v1309 = vmul.f32 %v1275, %v1298
        %v1310 = vmul.f32 %v1276, %v1308
        %v1312 = vperm.slane %v1258, 0
        %v1314 = vmul.f32 %v1309, %v1312
        %v1315 = vmul.f32 %v1310, %v1312
        %v1317 = vperm.slane %v1259, 0
        %v1319 = vadd.f32 %v1314, %v1317
        %v1320 = vadd.f32 %v1315, %v1317
        %v1321 = vpack.c.bf16 %v1320, %v1319
        %v1322 = vld [vmem:[%s822] sm:$0xf]
        %v1323 = vld [vmem:[%s822 + $0x4] sm:$0xf]
        %v1324 = vld [vmem:[%s822 + $0x8] sm:$0xf]
        %v1325 = vld [vmem:[%s822 + $0xc] sm:$0xf]
        %v1326 = vld [vmem:[%s825] sm:$0x1]
        %v1328 = vperm.slane %v1326, 0
        %v1334 = vunpack.c.l.b16 %v1322
        %v1335 = vunpack.c.l.b16 %v1323
        %v1336 = vunpack.c.l.b16 %v1324
        %v1337 = vunpack.c.l.b16 %v1325
        %v1338 = vpack.c.b16 %v1335, %v1334
        %v1339 = vpack.c.b16 %v1337, %v1336
        %v1343 = vsel %vm875, %v1321, 0
        %1345 = vmatpush.bf16.msra.mxu0 0
        %1346 = vmatpush.bf16.msra.mxu0 0
        %1347 = vmatpush.bf16.msra.mxu0 0
        %1348 = vmatpush.bf16.msra.mxu0 0
        %1349 = vmatpush.bf16.msra.mxu0 0
        %1350 = vmatpush.bf16.msra.mxu0 0
        %1351 = vmatpush.bf16.msra.mxu0 %v1339
        %1352 = vmatpush.bf16.msra.mxu0 %v1338
        %1353 = vmatmul.bf16.gmra.mxu0 %v1343
        %v1354 = vpop.f32.mrf.mxu0
        %v1355 = vadd.f32 %v1328, %v1354
        %v1356 = vpop.f32.mrf.mxu0
        %v1357 = vadd.f32 %v1328, %v1356
        %1358 = vdwg.mxu0
        %v1359 = vmul.f32 %v1355, %v1355
        %v1360 = vmul.f32 %v1357, %v1357
        %v1361 = vmul.f32 %v1355, %v1359
        %v1362 = vmul.f32 %v1357, %v1360
        %v1363 = vmul.f32 %v1361, 0.044715
        %v1364 = vmul.f32 %v1362, 0.044715
        %v1365 = vadd.f32 %v1355, %v1363
        %v1366 = vadd.f32 %v1357, %v1364
        %v1367 = vmul.f32 %v1365, 0.7978846
        %v1368 = vmul.f32 %v1366, 0.7978846
        %v1369 = vtanh.pop %v1367
        %v1370 = vtanh.pop %v1368
        %v1371 = vadd.f32 %v1369, 1.0
        %v1372 = vadd.f32 %v1370, 1.0
        %v1373 = vmul.f32 %v1371, 0.5
        %v1374 = vmul.f32 %v1372, 0.5
        %v1375 = vmul.f32 %v1355, %v1373
        %v1376 = vmul.f32 %v1357, %v1374
        %v1377 = vpack.c.bf16 %v1376, %v1375
        %v1378 = vld [vmem:[%s830] sm:$0xf]
        %v1379 = vld [vmem:[%s830 + $0x4] sm:$0xf]
        %v1380 = vld [vmem:[%s830 + $0x8] sm:$0xf]
        %v1381 = vld [vmem:[%s830 + $0xc] sm:$0xf]
        %v1382 = vld [vmem:[%s830 + $0x10] sm:$0xf]
        %v1383 = vld [vmem:[%s830 + $0x14] sm:$0xf]
        %v1384 = vld [vmem:[%s830 + $0x18] sm:$0xf]
        %v1385 = vld [vmem:[%s830 + $0x1c] sm:$0xf]
        %v1386 = vld [vmem:[%s830 + $0x20] sm:$0xf]
        %v1387 = vld [vmem:[%s830 + $0x24] sm:$0xf]
        %v1388 = vld [vmem:[%s830 + $0x28] sm:$0xf]
        %v1389 = vld [vmem:[%s830 + $0x2c] sm:$0xf]
        %v1390 = vld [vmem:[%s830 + $0x30] sm:$0xf]
        %v1391 = vld [vmem:[%s830 + $0x34] sm:$0xf]
        %v1392 = vld [vmem:[%s830 + $0x38] sm:$0xf]
        %v1393 = vld [vmem:[%s830 + $0x3c] sm:$0xf]
        %v1394 = vld [vmem:[%s833] sm:$0x1]
        %v1396 = vperm.slane %v1394, 0
        %v1414 = vunpack.c.l.b16 %v1378
        %v1415 = vunpack.c.l.b16 %v1379
        %v1416 = vunpack.c.l.b16 %v1380
        %v1417 = vunpack.c.l.b16 %v1381
        %v1418 = vunpack.c.l.b16 %v1382
        %v1419 = vunpack.c.l.b16 %v1383
        %v1420 = vunpack.c.l.b16 %v1384
        %v1421 = vunpack.c.l.b16 %v1385
        %v1422 = vunpack.c.l.b16 %v1386
        %v1423 = vunpack.c.l.b16 %v1387
        %v1424 = vunpack.c.l.b16 %v1388
        %v1425 = vunpack.c.l.b16 %v1389
        %v1426 = vunpack.c.l.b16 %v1390
        %v1427 = vunpack.c.l.b16 %v1391
        %v1428 = vunpack.c.l.b16 %v1392
        %v1429 = vunpack.c.l.b16 %v1393
        %v1430 = vpack.c.b16 %v1415, %v1414
        %v1431 = vpack.c.b16 %v1417, %v1416
        %v1432 = vpack.c.b16 %v1419, %v1418
        %v1433 = vpack.c.b16 %v1421, %v1420
        %v1434 = vpack.c.b16 %v1423, %v1422
        %v1435 = vpack.c.b16 %v1425, %v1424
        %v1436 = vpack.c.b16 %v1427, %v1426
        %v1437 = vpack.c.b16 %v1429, %v1428
        %1446 = vmatpush.bf16.msra.mxu0 %v1437
        %1447 = vmatpush.bf16.msra.mxu0 %v1436
        %1448 = vmatpush.bf16.msra.mxu0 %v1435
        %1449 = vmatpush.bf16.msra.mxu0 %v1434
        %1450 = vmatpush.bf16.msra.mxu0 %v1433
        %1451 = vmatpush.bf16.msra.mxu0 %v1432
        %1452 = vmatpush.bf16.msra.mxu0 %v1431
        %1453 = vmatpush.bf16.msra.mxu0 %v1430
        %1454 = vmatmul.bf16.gmra.mxu0 %v1377
        %v1455 = vpop.f32.mrf.mxu0
        %v1456 = vadd.f32 %v1396, %v1455
        %v1457 = vpop.f32.mrf.mxu0
        %v1458 = vadd.f32 %v1396, %v1457
        %1459 = vdwg.mxu0
        %v1460 = vadd.f32 %v1456, %v1319
        %v1461 = vadd.f32 %v1458, %v1320
        %v1462 = vld [vmem:[%s836] sm:$0x1]
        %v1463 = vld [vmem:[%s839] sm:$0x1]
        %v1464 = vsel %vm875, %v1460, 0.0
        %1465 = vadd.xlane.f32.xlu0 %v1464
        %v1466 = vpop.xlane.xlu0 %1465
        %v1467 = vsel %vm875, %v1461, 0.0
        %1468 = vadd.xlane.f32.xlu0 %v1467
        %v1469 = vpop.xlane.xlu0 %1468
        %v1470 = vmul.f32 %v1466, %v1272
        %v1471 = vmul.f32 %v1469, %v1272
        %v1472 = vsub.f32 %v1460, %v1470
        %v1473 = vsub.f32 %v1461, %v1471
        %v1474 = vmul.f32 %v1472, %v1472
        %v1475 = vmul.f32 %v1473, %v1473
        %v1476 = vsel %vm875, %v1474, 0.0
        %1477 = vadd.xlane.f32.xlu0 %v1476
        %v1478 = vpop.xlane.xlu0 %1477
        %v1479 = vsel %vm875, %v1475, 0.0
        %1480 = vadd.xlane.f32.xlu0 %v1479
        %v1481 = vpop.xlane.xlu0 %1480
        %v1482 = vmul.f32 %v1478, %v1272
        %v1483 = vmul.f32 %v1481, %v1272
        %v1484 = vadd.f32 %v1482, 1e-05
        %v1485 = vadd.f32 %v1483, 1e-05
        %v1486 = vrsqrt.pop %v1484
        %v1487 = vmul.f32 %v1486, %v1484
        %v1488 = vmul.f32 %v1487, %v1486
        %v1489 = vmul.f32 0.5, %v1488
        %v1490 = vsub.f32 1.5, %v1489
        %v1491 = vmul.f32 %v1486, %v1490
        %vm1492 = vweird.f32 %v1484
        %vm1493 = vweird.f32 %v1486
        %vm1494 = vmor %vm1492, %vm1493
        %v1495 = vsel %vm1494, %v1486, %v1491
        %v1496 = vrsqrt.pop %v1485
        %v1497 = vmul.f32 %v1496, %v1485
        %v1498 = vmul.f32 %v1497, %v1496
        %v1499 = vmul.f32 0.5, %v1498
        %v1500 = vsub.f32 1.5, %v1499
        %v1501 = vmul.f32 %v1496, %v1500
        %vm1502 = vweird.f32 %v1485
        %vm1503 = vweird.f32 %v1496
        %vm1504 = vmor %vm1502, %vm1503
        %v1505 = vsel %vm1504, %v1496, %v1501
        %v1506 = vmul.f32 %v1472, %v1495
        %v1507 = vmul.f32 %v1473, %v1505
        %v1509 = vperm.slane %v1462, 0
        %v1511 = vmul.f32 %v1506, %v1509
        %v1512 = vmul.f32 %v1507, %v1509
        %v1514 = vperm.slane %v1463, 0
        %v1516 = vadd.f32 %v1511, %v1514
        %v1517 = vadd.f32 %v1512, %v1514
        %1518 = vst.msk [vmem:[#allocation3] sm:$0xff] %vm875, %v1516
        %1519 = vst.msk [vmem:[#allocation3 + $0x8] sm:$0xff] %vm875, %v1517
        %s1520 = sand.u32 %s522, 1
        %s1521 = scalar_lea.sflag [#allocation6], %s1520
        %s1522 = sand.u32 %s522, 1
        %s1523 = smul.addr %s1522, 32
        %s1524 = scalar_lea.vmem [#allocation5], %s1523
        // Predicated region
        $region97: #{tpu_custom_call.1} parent=91 // pred_check
          %p1525 = pneg %p506
        $region98: #{tpu_custom_call.1} parent=91 // pred_check_branch
          %1527 = sbr.rel (%p1525) target = $region100
        $region99: #{tpu_custom_call.1} parent=91 // pred_region
          %1529 = vsyncadd [#allocation4], 0
          %s1530 = sshll.u32 [#allocation3], 4
          %s1531 = int_to_ptr.vmem [resolvable:$true] %s1530
          %s1532 = sshll.u32 %s18, 4
          %s1533 = int_to_ptr.hbm [resolvable:$true] %s1532
          %1538 = dma.vmem_to_hbm [thread:$0]  %s1531, 256, %s1533, [#allocation4], 128, 128, 8
        $region100: #{tpu_custom_call.1} parent=91 // pred_fallthru
          _
        // Predicated region
        $region101: #{tpu_custom_call.1} parent=91 // pred_check
          %p1539 = pneg %p532
        $region102: #{tpu_custom_call.1} parent=91 // pred_check_branch
          %1541 = sbr.rel (%p1539) target = $region104
        $region103: #{tpu_custom_call.1} parent=91 // pred_region
          %1543 = vsyncadd %s1521, 0
          %s1544 = smul.addr %s35, 4
          %s1545 = smul.addr %s1544, 8
          %s1546 = scalar_lea.hbm %s19, %s1545
          %s1547 = sshll.u32 %s1524, 4
          %s1548 = int_to_ptr.vmem [resolvable:$true] %s1547
          %s1549 = sshll.u32 %s1546, 4
          %s1550 = int_to_ptr.hbm [resolvable:$true] %s1549
          %1555 = dma.vmem_to_hbm [thread:$0]  %s1548, 512, %s1550, %s1521, 128, 128, 8
        $region104: #{tpu_custom_call.1} parent=91 // pred_fallthru
          _
        // Predicated region
        $region105: #{tpu_custom_call.1} parent=91 // pred_check
          %p1556 = pneg %p506
        $region106: #{tpu_custom_call.1} parent=91 // pred_check_branch
          %1558 = sbr.rel (%p1556) target = $region108
        $region107: #{tpu_custom_call.1} parent=91 // pred_region
          %1560 = dma.done [#allocation4], 256
        $region108: #{tpu_custom_call.1} parent=91 // pred_fallthru
          _
      $region92: #{tpu_custom_call.1} parent=5 // pred_fallthru
        _
      %p1561 = scmp.le.s32.totalorder 2, %s30
      // Predicated region
      $region109: #{tpu_custom_call.1} parent=5 // pred_check
        %p1562 = pneg %p1561
      $region110: #{tpu_custom_call.1} parent=5 // pred_check_branch
        %1564 = sbr.rel (%p1562) target = $region112
      $region111: #{tpu_custom_call.1} parent=5 // pred_region
        %s1565 = ssub.s32 %s30, 2
        // Predicated region
        $region113: #{tpu_custom_call.1} parent=111 // pred_check
          %p1566 = pneg %p538
        $region114: #{tpu_custom_call.1} parent=111 // pred_check_branch
          %1568 = sbr.rel (%p1566) target = $region116
        $region115: #{tpu_custom_call.1} parent=111 // pred_region
          %s1569 = sand.u32 %s523, 1
          %s1570 = scalar_lea.sflag [#allocation6], %s1569
          %s1571 = sand.u32 %s523, 1
          %s1572 = smul.addr %s1571, 32
          %s1573 = scalar_lea.vmem [#allocation5], %s1572
          %1575 = dma.done %s1570, 512
        $region116: #{tpu_custom_call.1} parent=111 // pred_fallthru
          _
      $region112: #{tpu_custom_call.1} parent=5 // pred_fallthru
        _
    $region6: #{tpu_custom_call.1} parent=1 // loop_footer
      %s34 = sadd.s32 1, %s30
    $region7: #{tpu_custom_call.1} parent=1 // loop_footer_branch
      %29 = sbr.rel target = $region3
    $region8: #{tpu_custom_call.1} parent=1 // loop_exit
      _
    %1576 = vsyncpa [#allocation4], 1
    %s1577 = scalar_lea.sflag [#allocation4], 1
    %1578 = vsyncpa %s1577, 1
    %1579 = vsyncpa [#allocation6], 1
    %s1580 = scalar_lea.sflag [#allocation6], 1
    %1581 = vsyncpa %s1580, 1

</llo_original>
